<compile_context>
chip_gen: v7x
topology: tpu7x:2x2x1
jax: 0.10.0
libtpu: 0.0.40
codegen_flags: <defaults>
</compile_context>

<pallas_src>
import functools

import jax
import jax.numpy as jnp
from jax.experimental import pallas as pl
from jax.experimental.pallas import tpu as pltpu

_LANE = 128
_SUBLANE = 8


def _round_up(x, m):
    return (x + m - 1) // m * m


def _inte_ae_kernel(x_ref, we_ref, wd_ref, g_ref, e_ref, bias_ref, out_ref):
    """Fused encoder + decoder on one (tile_p, size, W) slab of image rows.

    x_ref  : (TP, size, W)  input rows in native NCHW order (VMEM)
    we_ref : (size, W)      Conv2d weight, kw tiled along lanes (VMEM)
    wd_ref : (size, W)      ConvTranspose2d weight, kw tiled along lanes (VMEM)
    g_ref  : (W, Wp)        0/1 gather matrix: lane w -> patch w // size (VMEM)
    e_ref  : (Wp, W)        0/1 scatter matrix: patch pw -> its `size` lanes (VMEM)
    bias_ref: (2,)          [b_enc, b_dec] scalars (SMEM)
    out_ref: (TP, size, W)  decoded rows in native NCHW order (VMEM)
    """
    x = x_ref[...].astype(jnp.float32)

    # Encoder: weight the taps and reduce over kh (sublane axis, XLU) ...
    s = jnp.sum(x * we_ref[...][None, :, :], axis=1)                    # (TP, W)
    # ... then sum each group of `size` lanes with a skinny 0/1 matmul (MXU).
    z = jnp.dot(s, g_ref[...],
                preferred_element_type=jnp.float32,
                precision=jax.lax.Precision.HIGHEST) + bias_ref[0]      # (TP, Wp)

    # Decoder: broadcast each code back over its `size` lanes (0/1 matmul) ...
    zz = jnp.dot(z, e_ref[...],
                 preferred_element_type=jnp.float32,
                 precision=jax.lax.Precision.HIGHEST)                   # (TP, W)
    # ... and over the `size` kernel rows (VPU broadcast multiply-add).
    y = zz[:, None, :] * wd_ref[...][None, :, :] + bias_ref[1]          # (TP, size, W)
    out_ref[...] = y.astype(out_ref.dtype)


def _choose_tile_p(P, size, W, target_block_bytes=5 * 1024 * 1024):
    """Patch-rows per block: sized by padded-VMEM bytes, with >= ~4 grid steps
    when the problem is big enough (v7x megacore sharding + pipelining)."""
    row_bytes = _round_up(size, _SUBLANE) * _round_up(W, _LANE) * 4
    by_bytes = max(1, target_block_bytes // row_bytes)
    by_steps = pl.cdiv(P, 4)
    tile_p = max(1, min(P, by_bytes, by_steps))
    if tile_p >= _SUBLANE:
        tile_p = (tile_p // _SUBLANE) * _SUBLANE
    return tile_p


def inte_ae_forward(x, w_enc, b_enc, w_dec, b_dec, size):
    """Inte_AE.forward(x) = InteTranNN(InteNN(x)).

    x      : (N, 1, H, W), H % size == 0, W % size == 0
    w_enc  : (1, 1, size, size)   Conv2d weight
    b_enc  : (1,)                 Conv2d bias
    w_dec  : (1, 1, size, size)   ConvTranspose2d weight
    b_dec  : (1,)                 ConvTranspose2d bias
    returns: (N, 1, H, W), same dtype as x
    """
    N, C, H, W = x.shape
    assert C == 1 and H % size == 0 and W % size == 0
    Hp, Wp = H // size, W // size
    P = N * Hp

    # Free reshape of contiguous memory: row p = patch-row n*Hp + hp,
    # sublane kh = row inside the integration window, lanes = W.
    x3 = x.reshape(P, size, W)

    # Small constants (O(size*W + W*Wp) bytes), built once per call.
    we = jnp.tile(w_enc.reshape(size, size).astype(jnp.float32), (1, Wp))  # (size, W)
    wd = jnp.tile(w_dec.reshape(size, size).astype(jnp.float32), (1, Wp))  # (size, W)
    lane_group = jnp.arange(W, dtype=jnp.int32) // size
    gmat = (lane_group[:, None] ==
            jnp.arange(Wp, dtype=jnp.int32)[None, :]).astype(jnp.float32)  # (W, Wp)
    emat = (jnp.arange(Wp, dtype=jnp.int32)[:, None] ==
            lane_group[None, :]).astype(jnp.float32)                       # (Wp, W)
    biases = jnp.stack([b_enc.reshape(()), b_dec.reshape(())]).astype(jnp.float32)

    tile_p = _choose_tile_p(P, size, W)
    grid = (pl.cdiv(P, tile_p),)   # ragged last tile handled by Pallas (no jnp.pad)

    # TODO(synk): for very large W the (W, Wp) gather/scatter matrices grow as
    #             W^2/size; add a second grid axis tiling W in multiples of
    #             lcm(size, 128) if that ever matters.
    cost = pl.CostEstimate(
        flops=4 * P * size * W + 4 * P * W * Wp,
        transcendentals=0,
        bytes_accessed=2 * P * size * W * x.dtype.itemsize,
    )

    out3 = pl.pallas_call(
        _inte_ae_kernel,
        out_shape=jax.ShapeDtypeStruct((P, size, W), x.dtype),
        grid=grid,
        in_specs=[
            pl.BlockSpec((tile_p, size, W), lambda i: (i, 0, 0)),   # image rows
            pl.BlockSpec((size, W), lambda i: (0, 0)),              # encoder weight
            pl.BlockSpec((size, W), lambda i: (0, 0)),              # decoder weight
            pl.BlockSpec((W, Wp), lambda i: (0, 0)),                # lane-group gather
            pl.BlockSpec((Wp, W), lambda i: (0, 0)),                # lane-group scatter
            pl.BlockSpec(memory_space=pltpu.MemorySpace.SMEM),      # biases
        ],
        out_specs=pl.BlockSpec((tile_p, size, W), lambda i: (i, 0, 0)),
        compiler_params=pltpu.CompilerParams(
            dimension_semantics=("parallel",),
            vmem_limit_bytes=48 * 1024 * 1024,
        ),
        cost_estimate=cost,
    )(x3, we, wd, gmat, emat, biases)

    # Free reshape back to NCHW.
    return out3.reshape(N, 1, H, W)


def _reference_forward(x, w_enc, b_enc, w_dec, b_dec, size):
    """Pure-JAX reference: Conv2d(stride=size) then ConvTranspose2d(stride=size)."""
    N, _, H, W = x.shape
    Hp, Wp = H // size, W // size
    xp = (x.astype(jnp.float32)
          .reshape(N, Hp, size, Wp, size)
          .transpose(0, 1, 3, 2, 4)
          .reshape(N, Hp, Wp, size * size))
    z = jnp.einsum("nhwk,k->nhw", xp, w_enc.reshape(-1).astype(jnp.float32),
                   precision=jax.lax.Precision.HIGHEST) + b_enc[0]
    patches = (z[..., None] * w_dec.reshape(-1).astype(jnp.float32)[None, None, None, :]
               + b_dec[0])
    return (patches.reshape(N, Hp, Wp, size, size)
            .transpose(0, 1, 3, 2, 4)
            .reshape(N, 1, H, W))


if __name__ == "__main__":
    key = jax.random.PRNGKey(0)

    configs = [
        dict(size=4, N=2, H=64, W=64),     # small power-of-two case
        dict(size=11, N=1, H=44, W=44),    # module-default integration window
    ]
    for cfg in configs:
        size, N, H, W = cfg["size"], cfg["N"], cfg["H"], cfg["W"]
        key, k_x, k_we, k_be, k_wd, k_bd = jax.random.split(key, 6)

        x = jax.random.normal(k_x, (N, 1, H, W), dtype=jnp.float32)
        # PyTorch-like init: U(-1/sqrt(fan_in), 1/sqrt(fan_in)), fan_in = size*size.
        bound = 1.0 / (size * size) ** 0.5
        w_enc = jax.random.uniform(k_we, (1, 1, size, size), jnp.float32, -bound, bound)
        b_enc = jax.random.uniform(k_be, (1,), jnp.float32, -bound, bound)
        w_dec = jax.random.uniform(k_wd, (1, 1, size, size), jnp.float32, -bound, bound)
        b_dec = jax.random.uniform(k_bd, (1,), jnp.float32, -bound, bound)

        fwd = jax.jit(functools.partial(inte_ae_forward, size=size))
        y = jax.block_until_ready(fwd(x, w_enc, b_enc, w_dec, b_dec))

        y_ref = _reference_forward(x, w_enc, b_enc, w_dec, b_dec, size)
        assert y.shape == (N, 1, H, W)
        assert jnp.allclose(y, y_ref, atol=1e-3, rtol=1e-3), float(
            jnp.max(jnp.abs(y - y_ref)))

    print("KERNEL_OK")
</pallas_src>

<mosaic_0001>
module attributes {stable_mosaic.version = 11 : i64} {
  func.func @_inte_ae_kernel(%arg0: i32, %arg1: memref<8x4x64xf32, #tpu.memory_space<vmem>>, %arg2: memref<4x64xf32, #tpu.memory_space<vmem>>, %arg3: memref<4x64xf32, #tpu.memory_space<vmem>>, %arg4: memref<64x16xf32, #tpu.memory_space<vmem>>, %arg5: memref<16x64xf32, #tpu.memory_space<vmem>>, %arg6: memref<2xf32, #tpu.memory_space<smem>>, %arg7: memref<8x4x64xf32, #tpu.memory_space<vmem>>) attributes {dimension_semantics = [#tpu.dimension_semantics<parallel>], iteration_bounds = array<i64: 4>, scalar_prefetch = 0 : i64, scratch_operands = 0 : i64, tpu.core_type = #tpu.core_type<tc>, window_params = [{transform_indices = @transform_0, window_bounds = array<i64: 8, 4, 64>}, {pipeline_mode = #tpu.pipeline_mode<synchronous>, transform_indices = @transform_1, window_bounds = array<i64: 4, 64>}, {pipeline_mode = #tpu.pipeline_mode<synchronous>, transform_indices = @transform_2, window_bounds = array<i64: 4, 64>}, {pipeline_mode = #tpu.pipeline_mode<synchronous>, transform_indices = @transform_3, window_bounds = array<i64: 64, 16>}, {pipeline_mode = #tpu.pipeline_mode<synchronous>, transform_indices = @transform_4, window_bounds = array<i64: 16, 64>}, {transform_indices = @transform_5, window_bounds = array<i64: 2>}, {transform_indices = @transform_6, window_bounds = array<i64: 8, 4, 64>}]} {
    %c0 = arith.constant 0 : index
    %c0_0 = arith.constant 0 : index
    %c0_1 = arith.constant 0 : index
    %0 = vector.load %arg1[%c0, %c0_0, %c0_1] : memref<8x4x64xf32, #tpu.memory_space<vmem>>, vector<8x4x64xf32>
    %c0_2 = arith.constant 0 : index
    %c0_3 = arith.constant 0 : index
    %1 = vector.load %arg2[%c0_2, %c0_3] : memref<4x64xf32, #tpu.memory_space<vmem>>, vector<4x64xf32>
    %2 = vector.shape_cast %1 : vector<4x64xf32> to vector<1x4x64xf32>
    %3 = vector.broadcast %2 : vector<1x4x64xf32> to vector<8x4x64xf32>
    %4 = arith.mulf %0, %3 : vector<8x4x64xf32>
    %cst = arith.constant dense<0.000000e+00> : vector<8x64xf32>
    %5 = vector.multi_reduction <add>, %4, %cst [1] : vector<8x4x64xf32> to vector<8x64xf32>
    %c0_4 = arith.constant 0 : index
    %c0_5 = arith.constant 0 : index
    %6 = vector.load %arg4[%c0_4, %c0_5] : memref<64x16xf32, #tpu.memory_space<vmem>>, vector<64x16xf32>
    %cst_6 = arith.constant dense<0.000000e+00> : vector<8x16xf32>
    %7 = tpu.matmul %5, %6, %cst_6 {dimension_numbers = #tpu.dot_dimension_numbers<[1], [0], [0], [1], [0, 0, 1, 1], [], []>, precision = #tpu.contract_precision<fp32>} : vector<8x64xf32>, vector<64x16xf32>, vector<8x16xf32> -> vector<8x16xf32>
    %c0_7 = arith.constant 0 : index
    %8 = memref.load %arg6[%c0_7] : memref<2xf32, #tpu.memory_space<smem>>
    %9 = vector.broadcast %8 : f32 to vector<8x16xf32>
    %10 = arith.addf %7, %9 : vector<8x16xf32>
    %c0_8 = arith.constant 0 : index
    %c0_9 = arith.constant 0 : index
    %11 = vector.load %arg5[%c0_8, %c0_9] : memref<16x64xf32, #tpu.memory_space<vmem>>, vector<16x64xf32>
    %cst_10 = arith.constant dense<0.000000e+00> : vector<8x64xf32>
    %12 = tpu.matmul %10, %11, %cst_10 {dimension_numbers = #tpu.dot_dimension_numbers<[1], [0], [0], [1], [0, 0, 1, 1], [], []>, precision = #tpu.contract_precision<fp32>} : vector<8x16xf32>, vector<16x64xf32>, vector<8x64xf32> -> vector<8x64xf32>
    %13 = vector.shape_cast %12 : vector<8x64xf32> to vector<8x1x64xf32>
    %c0_11 = arith.constant 0 : index
    %c0_12 = arith.constant 0 : index
    %14 = vector.load %arg3[%c0_11, %c0_12] : memref<4x64xf32, #tpu.memory_space<vmem>>, vector<4x64xf32>
    %15 = vector.shape_cast %14 : vector<4x64xf32> to vector<1x4x64xf32>
    %16 = vector.broadcast %13 : vector<8x1x64xf32> to vector<8x4x64xf32>
    %17 = vector.broadcast %15 : vector<1x4x64xf32> to vector<8x4x64xf32>
    %18 = arith.mulf %16, %17 : vector<8x4x64xf32>
    %c1 = arith.constant 1 : index
    %19 = memref.load %arg6[%c1] : memref<2xf32, #tpu.memory_space<smem>>
    %20 = vector.broadcast %19 : f32 to vector<8x4x64xf32>
    %21 = arith.addf %18, %20 : vector<8x4x64xf32>
    %c0_13 = arith.constant 0 : index
    %c0_14 = arith.constant 0 : index
    %c0_15 = arith.constant 0 : index
    %22 = vector.load %arg7[%c0_13, %c0_14, %c0_15] : memref<8x4x64xf32, #tpu.memory_space<vmem>>, vector<8x4x64xf32>
    tpu.vector_store %arg7[%c0_13, %c0_14, %c0_15], %21 {strides = array<i32>} : memref<8x4x64xf32, #tpu.memory_space<vmem>>, vector<8x4x64xf32>,
    return
  }
  func.func @transform_0(%arg0: i32) -> (i32, i32, i32) {
    %c0_i32 = arith.constant 0 : i32
    %c0_i32_0 = arith.constant 0 : i32
    %c0_i32_1 = arith.constant 0 : i32
    return %arg0, %c0_i32, %c0_i32_0 : i32, i32, i32
  }
  func.func @transform_1(%arg0: i32) -> (i32, i32) {
    %c0_i32 = arith.constant 0 : i32
    %c0_i32_0 = arith.constant 0 : i32
    %c0_i32_1 = arith.constant 0 : i32
    return %c0_i32, %c0_i32_0 : i32, i32
  }
  func.func @transform_2(%arg0: i32) -> (i32, i32) {
    %c0_i32 = arith.constant 0 : i32
    %c0_i32_0 = arith.constant 0 : i32
    %c0_i32_1 = arith.constant 0 : i32
    return %c0_i32, %c0_i32_0 : i32, i32
  }
  func.func @transform_3(%arg0: i32) -> (i32, i32) {
    %c0_i32 = arith.constant 0 : i32
    %c0_i32_0 = arith.constant 0 : i32
    %c0_i32_1 = arith.constant 0 : i32
    return %c0_i32, %c0_i32_0 : i32, i32
  }
  func.func @transform_4(%arg0: i32) -> (i32, i32) {
    %c0_i32 = arith.constant 0 : i32
    %c0_i32_0 = arith.constant 0 : i32
    %c0_i32_1 = arith.constant 0 : i32
    return %c0_i32, %c0_i32_0 : i32, i32
  }
  func.func @transform_5(%arg0: i32) -> i32 {
    %c0_i32 = arith.constant 0 : i32
    %c0_i32_0 = arith.constant 0 : i32
    return %c0_i32 : i32
  }
  func.func @transform_6(%arg0: i32) -> (i32, i32, i32) {
    %c0_i32 = arith.constant 0 : i32
    %c0_i32_0 = arith.constant 0 : i32
    %c0_i32_1 = arith.constant 0 : i32
    return %arg0, %c0_i32, %c0_i32_0 : i32, i32, i32
  }
}

</mosaic_0001>

<llo_original>
// kernel: tile.11
$region0: #{tile.11}
  %s0 = inlined_call_operand.vmem [shape: f32[4,16,4], index: 0, kind: input, shape index: {}]
  %s1 = inlined_call_operand.vmem [shape: f32[4,64], index: 1, kind: output, shape index: {}]
  $region1: #{tile.11} parent=0
    #allocation0 [shape = 'u8[4096]{0}', space=vmem, size = 0x1000, scoped, tag = 'scoped mem for output reshape']
    %s2 = smov 3
    %v3 = vld [vmem:[%s0] ss:$16 sm:%s2]
    %s4 = smov 12
    %v5 = vld [vmem:[%s0] ss:$16 sm:%s4]
    %vm6 = vcmask 1043458
    %v7 = vsel %vm6, %v5, %v3
    %vm8 = vcmask 31744
    %9 = vst.msk [vmem:[#allocation0] sm:$0xf] %vm8, %v7
    %s10 = scalar_lea.vmem %s0, 15
    %s11 = smov 3
    %v12 = vld [vmem:[%s10] ss:$16 sm:%s11]
    %s13 = scalar_lea.vmem %s0, 15
    %s14 = smov 12
    %v15 = vld [vmem:[%s13] ss:$16 sm:%s14]
    %vm16 = vcmask 1043458
    %v17 = vsel %vm16, %v15, %v12
    %18 = vrot.lane.b32.xlu0 %v17, 60
    %v19 = vpop.permute.xlu0 %18
    %vm20 = vcmask 523744
    %21 = vst.msk [vmem:[#allocation0] sm:$0xf] %vm20, %v19
    %s22 = scalar_lea.vmem %s0, 14
    %s23 = smov 3
    %v24 = vld [vmem:[%s22] ss:$16 sm:%s23]
    %s25 = scalar_lea.vmem %s0, 14
    %s26 = smov 12
    %v27 = vld [vmem:[%s25] ss:$16 sm:%s26]
    %vm28 = vcmask 1043458
    %v29 = vsel %vm28, %v27, %v24
    %30 = vrot.lane.b32.xlu0 %v29, 56
    %v31 = vpop.permute.xlu0 %30
    %vm32 = vcmask 490944
    %33 = vst.msk [vmem:[#allocation0] sm:$0xf] %vm32, %v31
    %s34 = scalar_lea.vmem %s0, 13
    %s35 = smov 3
    %v36 = vld [vmem:[%s34] ss:$16 sm:%s35]
    %s37 = scalar_lea.vmem %s0, 13
    %s38 = smov 12
    %v39 = vld [vmem:[%s37] ss:$16 sm:%s38]
    %vm40 = vcmask 1043458
    %v41 = vsel %vm40, %v39, %v36
    %42 = vrot.lane.b32.xlu0 %v41, 52
    %v43 = vpop.permute.xlu0 %42
    %vm44 = vcmask 458144
    %45 = vst.msk [vmem:[#allocation0] sm:$0xf] %vm44, %v43
    %s46 = scalar_lea.vmem %s0, 12
    %s47 = smov 3
    %v48 = vld [vmem:[%s46] ss:$16 sm:%s47]
    %s49 = scalar_lea.vmem %s0, 12
    %s50 = smov 12
    %v51 = vld [vmem:[%s49] ss:$16 sm:%s50]
    %vm52 = vcmask 1043458
    %v53 = vsel %vm52, %v51, %v48
    %54 = vrot.lane.b32.xlu0 %v53, 48
    %v55 = vpop.permute.xlu0 %54
    %vm56 = vcmask 425344
    %57 = vst.msk [vmem:[#allocation0] sm:$0xf] %vm56, %v55
    %s58 = scalar_lea.vmem %s0, 11
    %s59 = smov 3
    %v60 = vld [vmem:[%s58] ss:$16 sm:%s59]
    %s61 = scalar_lea.vmem %s0, 11
    %s62 = smov 12
    %v63 = vld [vmem:[%s61] ss:$16 sm:%s62]
    %vm64 = vcmask 1043458
    %v65 = vsel %vm64, %v63, %v60
    %66 = vrot.lane.b32.xlu0 %v65, 44
    %v67 = vpop.permute.xlu0 %66
    %vm68 = vcmask 392544
    %69 = vst.msk [vmem:[#allocation0] sm:$0xf] %vm68, %v67
    %s70 = scalar_lea.vmem %s0, 10
    %s71 = smov 3
    %v72 = vld [vmem:[%s70] ss:$16 sm:%s71]
    %s73 = scalar_lea.vmem %s0, 10
    %s74 = smov 12
    %v75 = vld [vmem:[%s73] ss:$16 sm:%s74]
    %vm76 = vcmask 1043458
    %v77 = vsel %vm76, %v75, %v72
    %78 = vrot.lane.b32.xlu0 %v77, 40
    %v79 = vpop.permute.xlu0 %78
    %vm80 = vcmask 359744
    %81 = vst.msk [vmem:[#allocation0] sm:$0xf] %vm80, %v79
    %s82 = scalar_lea.vmem %s0, 9
    %s83 = smov 3
    %v84 = vld [vmem:[%s82] ss:$16 sm:%s83]
    %s85 = scalar_lea.vmem %s0, 9
    %s86 = smov 12
    %v87 = vld [vmem:[%s85] ss:$16 sm:%s86]
    %vm88 = vcmask 1043458
    %v89 = vsel %vm88, %v87, %v84
    %90 = vrot.lane.b32.xlu0 %v89, 36
    %v91 = vpop.permute.xlu0 %90
    %vm92 = vcmask 326944
    %93 = vst.msk [vmem:[#allocation0] sm:$0xf] %vm92, %v91
    %s94 = scalar_lea.vmem %s0, 8
    %s95 = smov 3
    %v96 = vld [vmem:[%s94] ss:$16 sm:%s95]
    %s97 = scalar_lea.vmem %s0, 8
    %s98 = smov 12
    %v99 = vld [vmem:[%s97] ss:$16 sm:%s98]
    %vm100 = vcmask 1043458
    %v101 = vsel %vm100, %v99, %v96
    %102 = vrot.lane.b32.xlu0 %v101, 32
    %v103 = vpop.permute.xlu0 %102
    %vm104 = vcmask 294144
    %105 = vst.msk [vmem:[#allocation0] sm:$0xf] %vm104, %v103
    %s106 = scalar_lea.vmem %s0, 7
    %s107 = smov 3
    %v108 = vld [vmem:[%s106] ss:$16 sm:%s107]
    %s109 = scalar_lea.vmem %s0, 7
    %s110 = smov 12
    %v111 = vld [vmem:[%s109] ss:$16 sm:%s110]
    %vm112 = vcmask 1043458
    %v113 = vsel %vm112, %v111, %v108
    %114 = vrot.lane.b32.xlu0 %v113, 28
    %v115 = vpop.permute.xlu0 %114
    %vm116 = vcmask 261344
    %117 = vst.msk [vmem:[#allocation0] sm:$0xf] %vm116, %v115
    %s118 = scalar_lea.vmem %s0, 6
    %s119 = smov 3
    %v120 = vld [vmem:[%s118] ss:$16 sm:%s119]
    %s121 = scalar_lea.vmem %s0, 6
    %s122 = smov 12
    %v123 = vld [vmem:[%s121] ss:$16 sm:%s122]
    %vm124 = vcmask 1043458
    %v125 = vsel %vm124, %v123, %v120
    %126 = vrot.lane.b32.xlu0 %v125, 24
    %v127 = vpop.permute.xlu0 %126
    %vm128 = vcmask 228544
    %129 = vst.msk [vmem:[#allocation0] sm:$0xf] %vm128, %v127
    %s130 = scalar_lea.vmem %s0, 5
    %s131 = smov 3
    %v132 = vld [vmem:[%s130] ss:$16 sm:%s131]
    %s133 = scalar_lea.vmem %s0, 5
    %s134 = smov 12
    %v135 = vld [vmem:[%s133] ss:$16 sm:%s134]
    %vm136 = vcmask 1043458
    %v137 = vsel %vm136, %v135, %v132
    %138 = vrot.lane.b32.xlu0 %v137, 20
    %v139 = vpop.permute.xlu0 %138
    %vm140 = vcmask 195744
    %141 = vst.msk [vmem:[#allocation0] sm:$0xf] %vm140, %v139
    %s142 = scalar_lea.vmem %s0, 4
    %s143 = smov 3
    %v144 = vld [vmem:[%s142] ss:$16 sm:%s143]
    %s145 = scalar_lea.vmem %s0, 4
    %s146 = smov 12
    %v147 = vld [vmem:[%s145] ss:$16 sm:%s146]
    %vm148 = vcmask 1043458
    %v149 = vsel %vm148, %v147, %v144
    %150 = vrot.lane.b32.xlu0 %v149, 16
    %v151 = vpop.permute.xlu0 %150
    %vm152 = vcmask 162944
    %153 = vst.msk [vmem:[#allocation0] sm:$0xf] %vm152, %v151
    %s154 = scalar_lea.vmem %s0, 3
    %s155 = smov 3
    %v156 = vld [vmem:[%s154] ss:$16 sm:%s155]
    %s157 = scalar_lea.vmem %s0, 3
    %s158 = smov 12
    %v159 = vld [vmem:[%s157] ss:$16 sm:%s158]
    %vm160 = vcmask 1043458
    %v161 = vsel %vm160, %v159, %v156
    %162 = vrot.lane.b32.xlu0 %v161, 12
    %v163 = vpop.permute.xlu0 %162
    %vm164 = vcmask 130144
    %165 = vst.msk [vmem:[#allocation0] sm:$0xf] %vm164, %v163
    %s166 = scalar_lea.vmem %s0, 2
    %s167 = smov 3
    %v168 = vld [vmem:[%s166] ss:$16 sm:%s167]
    %s169 = scalar_lea.vmem %s0, 2
    %s170 = smov 12
    %v171 = vld [vmem:[%s169] ss:$16 sm:%s170]
    %vm172 = vcmask 1043458
    %v173 = vsel %vm172, %v171, %v168
    %174 = vrot.lane.b32.xlu0 %v173, 8
    %v175 = vpop.permute.xlu0 %174
    %vm176 = vcmask 97344
    %177 = vst.msk [vmem:[#allocation0] sm:$0xf] %vm176, %v175
    %s178 = scalar_lea.vmem %s0, 1
    %s179 = smov 3
    %v180 = vld [vmem:[%s178] ss:$16 sm:%s179]
    %s181 = scalar_lea.vmem %s0, 1
    %s182 = smov 12
    %v183 = vld [vmem:[%s181] ss:$16 sm:%s182]
    %vm184 = vcmask 1043458
    %v185 = vsel %vm184, %v183, %v180
    %186 = vrot.lane.b32.xlu0 %v185, 4
    %v187 = vpop.permute.xlu0 %186
    %vm188 = vcmask 64544
    %189 = vst.msk [vmem:[#allocation0] sm:$0xf] %vm188, %v187
    %s191 = sshllo.u32 0, 4
    %v193 = vld [vmem:[#allocation0] sm:%s191]
    %s194 = sshllo.u32 0, 4
    %195 = vst [vmem:[%s1] sm:%s194] %v193

// kernel: inte_ae_forward.1
$region0: #{inte_ae_forward.1}
  #allocation0 [shape = 'u32[]', space=smem, size = 0x4, offset = 0x4, fixed_abs, tag = 'smem constant byte address 0x4 - core index']
  #allocation1 [shape = 'u32[144,128]{1,0:T(1,128)}', space=vmem, size = 0x12000, scoped, tag = 'internal scratch']
  %s0 = inlined_call_operand.vmem [shape: f32[32,4,64], index: 0, kind: input, shape index: {}]
  %s1 = inlined_call_operand.vmem [shape: f32[4,64], index: 1, kind: input, shape index: {}]
  %s2 = inlined_call_operand.vmem [shape: f32[4,64], index: 2, kind: input, shape index: {}]
  %s3 = inlined_call_operand.vmem [shape: f32[64,16], index: 3, kind: input, shape index: {}]
  %s4 = inlined_call_operand.vmem [shape: f32[16,64], index: 4, kind: input, shape index: {}]
  %s5 = inlined_call_operand.vmem [shape: f32[2], index: 5, kind: input, shape index: {}]
  %s6 = inlined_call_operand.hbm [shape: f32[32,4,64], index: 6, kind: output, shape index: {}]
  %s7 = sld [smem:[#allocation0]]
  $region61: #{inte_ae_forward.1} parent=0
    _
  %s9 = ssub.s32 1, %s7
  %s10 = scalar_select 0, %s9, %s7
  $region1: #{inte_ae_forward.1} parent=0
    #allocation2 [shape = 'u8[512]{0}', space=smem, size = 0x200, scoped, tag = 'input window, operand 5, single buffered']
    #allocation3 [shape = 's32[2]{0}', space=sflag, size = 0x8, scoped, tag = 'scoped memory for inte_ae_forward.1']
    #allocation4 [shape = 's32[2]{0}', space=sflag, size = 0x8, scoped, tag = 'scoped memory for inte_ae_forward.1']
    #allocation5 [shape = 'u8[32768]{0}', space=vmem, size = 0x8000, scoped, tag = 'output window, operand 0']
    %11 = vsyncpa [#allocation4], 0
    %12 = vsyncpa [#allocation3], 0
    %s13 = scalar_lea.sflag [#allocation3], 1
    %14 = vsyncpa %s13, 0
    loop: start=0, step=1, limit=6
    $region2: #{inte_ae_forward.1} parent=1 // loop_pre_header
      _
    $region3: #{inte_ae_forward.1} parent=1 // loop_header
      %s16 = sphi 0, %s20
      %p17 = scmp.ge.s32.totalorder %s16, 6
      %s26 = sphi 0, %s28
      %s29 = sphi 0, %s26
      %s30 = sphi 0, %s29
      %s46 = sphi 0, %s30
      %s50 = sphi 0, %s50
      %s52 = sphi 0, %s50
      %s53 = sphi 0, %s52
      %s67 = sphi 0, %s53
      %s71 = sphi 0, %s71
      %s73 = sphi 0, %s71
      %s74 = sphi 0, %s73
      %s88 = sphi 0, %s74
      %s92 = sphi 0, %s92
      %s94 = sphi 0, %s92
      %s95 = sphi 0, %s94
      %s109 = sphi 0, %s95
      %s113 = sphi 0, %s113
      %s115 = sphi 0, %s113
      %s116 = sphi 0, %s115
      %s130 = sphi 0, %s116
      %s134 = sphi 0, %s134
      %s136 = sphi 0, %s134
      %s137 = sphi 0, %s136
      %s151 = sphi 0, %s137
      %s157 = sphi 0, %s159
      %s160 = sphi 0, %s157
      %s161 = sphi 0, %s160
      %s177 = sphi 0, %s161
    $region4: #{inte_ae_forward.1} parent=1 // loop_header_branch
      %19 = sbr.rel (%p17) target = $region8
    $region5: #{inte_ae_forward.1} parent=1 // loop_body
      %s21 = ssub.s32 %s16, 1
      %s22 = ssub.s32 %s16, 2
      %s23 = sadd.s32 %s16, 1
      %s24 = ssub.s32 %s16, %s23
      %p25 = scmp.eq.s32.totalorder %s24, 0
      %s27 = sadd.s32 %s26, 1
      %s28 = scalar_select %p25, %s26, %s27
      %p31 = pneg %p25
      %p32 = scmp.eq.s32.totalorder %s16, 3
      %p33 = por %p31, %p32
      %p34 = scmp.ne.s32.totalorder %s26, %s29
      %p35 = scmp.eq.s32.totalorder %s16, 0
      %p36 = por %p34, %p35
      %p37 = scmp.ne.s32.totalorder %s26, %s29
      %p38 = scmp.eq.s32.totalorder %s21, 3
      %p39 = por %p37, %p38
      %p40 = scmp.ne.s32.totalorder %s29, %s30
      %p41 = scmp.eq.s32.totalorder %s21, 0
      %p42 = por %p40, %p41
      %p43 = scmp.ne.s32.totalorder %s29, %s30
      %p44 = scmp.eq.s32.totalorder %s22, 3
      %p45 = por %p43, %p44
      %p47 = scmp.ne.s32.totalorder %s30, %s46
      %p48 = scmp.eq.s32.totalorder %s22, 0
      %p49 = por %p47, %p48
      %s51 = sadd.s32 %s50, 1
      %p54 = scmp.eq.s32.totalorder %s16, 3
      %p55 = scmp.ne.s32.totalorder %s50, %s52
      %p56 = scmp.eq.s32.totalorder %s16, 0
      %p57 = por %p55, %p56
      %p58 = scmp.ne.s32.totalorder %s50, %s52
      %p59 = scmp.eq.s32.totalorder %s21, 3
      %p60 = por %p58, %p59
      %p61 = scmp.ne.s32.totalorder %s52, %s53
      %p62 = scmp.eq.s32.totalorder %s21, 0
      %p63 = por %p61, %p62
      %p64 = scmp.ne.s32.totalorder %s52, %s53
      %p65 = scmp.eq.s32.totalorder %s22, 3
      %p66 = por %p64, %p65
      %p68 = scmp.ne.s32.totalorder %s53, %s67
      %p69 = scmp.eq.s32.totalorder %s22, 0
      %p70 = por %p68, %p69
      %s72 = sadd.s32 %s71, 1
      %p75 = scmp.eq.s32.totalorder %s16, 3
      %p76 = scmp.ne.s32.totalorder %s71, %s73
      %p77 = scmp.eq.s32.totalorder %s16, 0
      %p78 = por %p76, %p77
      %p79 = scmp.ne.s32.totalorder %s71, %s73
      %p80 = scmp.eq.s32.totalorder %s21, 3
      %p81 = por %p79, %p80
      %p82 = scmp.ne.s32.totalorder %s73, %s74
      %p83 = scmp.eq.s32.totalorder %s21, 0
      %p84 = por %p82, %p83
      %p85 = scmp.ne.s32.totalorder %s73, %s74
      %p86 = scmp.eq.s32.totalorder %s22, 3
      %p87 = por %p85, %p86
      %p89 = scmp.ne.s32.totalorder %s74, %s88
      %p90 = scmp.eq.s32.totalorder %s22, 0
      %p91 = por %p89, %p90
      %s93 = sadd.s32 %s92, 1
      %p96 = scmp.eq.s32.totalorder %s16, 3
      %p97 = scmp.ne.s32.totalorder %s92, %s94
      %p98 = scmp.eq.s32.totalorder %s16, 0
      %p99 = por %p97, %p98
      %p100 = scmp.ne.s32.totalorder %s92, %s94
      %p101 = scmp.eq.s32.totalorder %s21, 3
      %p102 = por %p100, %p101
      %p103 = scmp.ne.s32.totalorder %s94, %s95
      %p104 = scmp.eq.s32.totalorder %s21, 0
      %p105 = por %p103, %p104
      %p106 = scmp.ne.s32.totalorder %s94, %s95
      %p107 = scmp.eq.s32.totalorder %s22, 3
      %p108 = por %p106, %p107
      %p110 = scmp.ne.s32.totalorder %s95, %s109
      %p111 = scmp.eq.s32.totalorder %s22, 0
      %p112 = por %p110, %p111
      %s114 = sadd.s32 %s113, 1
      %p117 = scmp.eq.s32.totalorder %s16, 3
      %p118 = scmp.ne.s32.totalorder %s113, %s115
      %p119 = scmp.eq.s32.totalorder %s16, 0
      %p120 = por %p118, %p119
      %p121 = scmp.ne.s32.totalorder %s113, %s115
      %p122 = scmp.eq.s32.totalorder %s21, 3
      %p123 = por %p121, %p122
      %p124 = scmp.ne.s32.totalorder %s115, %s116
      %p125 = scmp.eq.s32.totalorder %s21, 0
      %p126 = por %p124, %p125
      %p127 = scmp.ne.s32.totalorder %s115, %s116
      %p128 = scmp.eq.s32.totalorder %s22, 3
      %p129 = por %p127, %p128
      %p131 = scmp.ne.s32.totalorder %s116, %s130
      %p132 = scmp.eq.s32.totalorder %s22, 0
      %p133 = por %p131, %p132
      %s135 = sadd.s32 %s134, 1
      %p138 = scmp.eq.s32.totalorder %s16, 3
      %p139 = scmp.ne.s32.totalorder %s134, %s136
      %p140 = scmp.eq.s32.totalorder %s16, 0
      %p141 = por %p139, %p140
      %p142 = scmp.ne.s32.totalorder %s134, %s136
      %p143 = scmp.eq.s32.totalorder %s21, 3
      %p144 = por %p142, %p143
      %p145 = scmp.ne.s32.totalorder %s136, %s137
      %p146 = scmp.eq.s32.totalorder %s21, 0
      %p147 = por %p145, %p146
      %p148 = scmp.ne.s32.totalorder %s136, %s137
      %p149 = scmp.eq.s32.totalorder %s22, 3
      %p150 = por %p148, %p149
      %p152 = scmp.ne.s32.totalorder %s137, %s151
      %p153 = scmp.eq.s32.totalorder %s22, 0
      %p154 = por %p152, %p153
      %s155 = ssub.s32 %s16, %s23
      %p156 = scmp.eq.s32.totalorder %s155, 0
      %s158 = sadd.s32 %s157, 1
      %s159 = scalar_select %p156, %s157, %s158
      %p162 = pneg %p156
      %p163 = scmp.eq.s32.totalorder %s16, 3
      %p164 = por %p162, %p163
      %p165 = scmp.ne.s32.totalorder %s157, %s160
      %p166 = scmp.eq.s32.totalorder %s16, 0
      %p167 = por %p165, %p166
      %p168 = scmp.ne.s32.totalorder %s157, %s160
      %p169 = scmp.eq.s32.totalorder %s21, 3
      %p170 = por %p168, %p169
      %p171 = scmp.ne.s32.totalorder %s160, %s161
      %p172 = scmp.eq.s32.totalorder %s21, 0
      %p173 = por %p171, %p172
      %p174 = scmp.ne.s32.totalorder %s160, %s161
      %p175 = scmp.eq.s32.totalorder %s22, 3
      %p176 = por %p174, %p175
      %p178 = scmp.ne.s32.totalorder %s161, %s177
      %p179 = scmp.eq.s32.totalorder %s22, 0
      %p180 = por %p178, %p179
      %p181 = scmp.le.s32.totalorder 1, %s16
      %p182 = scmp.lt.s32.totalorder %s16, 5
      %p183 = pnand %p181, %p182
      %p184 = pneg %p183
      // Predicated region
      $region9: #{inte_ae_forward.1} parent=5 // pred_check
        _
      $region10: #{inte_ae_forward.1} parent=5 // pred_check_branch
        %186 = sbr.rel (%p183) target = $region12
      $region11: #{inte_ae_forward.1} parent=5 // pred_region
        %s187 = ssub.s32 %s16, 1
        // Predicated region
        $region13: #{inte_ae_forward.1} parent=11 // pred_check
          %p188 = pneg %p63
        $region14: #{inte_ae_forward.1} parent=11 // pred_check_branch
          %190 = sbr.rel (%p188) target = $region16
        $region15: #{inte_ae_forward.1} parent=11 // pred_region
          _
        $region16: #{inte_ae_forward.1} parent=11 // pred_fallthru
          _
        // Predicated region
        $region17: #{inte_ae_forward.1} parent=11 // pred_check
          %p191 = pneg %p84
        $region18: #{inte_ae_forward.1} parent=11 // pred_check_branch
          %193 = sbr.rel (%p191) target = $region20
        $region19: #{inte_ae_forward.1} parent=11 // pred_region
          _
        $region20: #{inte_ae_forward.1} parent=11 // pred_fallthru
          _
        // Predicated region
        $region21: #{inte_ae_forward.1} parent=11 // pred_check
          %p194 = pneg %p105
        $region22: #{inte_ae_forward.1} parent=11 // pred_check_branch
          %196 = sbr.rel (%p194) target = $region24
        $region23: #{inte_ae_forward.1} parent=11 // pred_region
          _
        $region24: #{inte_ae_forward.1} parent=11 // pred_fallthru
          _
        // Predicated region
        $region25: #{inte_ae_forward.1} parent=11 // pred_check
          %p197 = pneg %p126
        $region26: #{inte_ae_forward.1} parent=11 // pred_check_branch
          %199 = sbr.rel (%p197) target = $region28
        $region27: #{inte_ae_forward.1} parent=11 // pred_region
          _
        $region28: #{inte_ae_forward.1} parent=11 // pred_fallthru
          _
        // Predicated region
        $region29: #{inte_ae_forward.1} parent=11 // pred_check
          %p200 = pneg %p147
        $region30: #{inte_ae_forward.1} parent=11 // pred_check_branch
          %202 = sbr.rel (%p200) target = $region32
        $region31: #{inte_ae_forward.1} parent=11 // pred_region
          %s204 = ssub.s32 16, 16
          %205 = vsyncadd [#allocation4], %s204
          %s207 = sshll.u32 %s5, 4
          %s208 = int_to_ptr.vmem [resolvable:$true] %s207
          %210 = dma.vmem_to_smem %s208, 16, [#allocation2], [#allocation4]
        $region32: #{inte_ae_forward.1} parent=11 // pred_fallthru
          _
      $region12: #{inte_ae_forward.1} parent=5 // pred_fallthru
        _
      %p211 = scmp.lt.s32.totalorder %s16, 4
      // Predicated region
      $region33: #{inte_ae_forward.1} parent=5 // pred_check
        %p212 = pneg %p211
      $region34: #{inte_ae_forward.1} parent=5 // pred_check_branch
        %214 = sbr.rel (%p212) target = $region36
      $region35: #{inte_ae_forward.1} parent=5 // pred_region
        // Predicated region
        $region37: #{inte_ae_forward.1} parent=35 // pred_check
          %p215 = pneg %p36
        $region38: #{inte_ae_forward.1} parent=35 // pred_check_branch
          %217 = sbr.rel (%p215) target = $region40
        $region39: #{inte_ae_forward.1} parent=35 // pred_region
          %s218 = smul.u32 8, %s16
          %p219 = scmp.lt.s32.totalorder %s218, 31
          %s220 = scalar_select %p219, %s218, 31
          %s221 = smul.addr %s220, 4
          %s222 = scalar_lea.vmem %s0, %s221
          %s223 = smul.u32 8, %s16
        $region40: #{inte_ae_forward.1} parent=35 // pred_fallthru
          _
      $region36: #{inte_ae_forward.1} parent=5 // pred_fallthru
        _
      %p224 = scmp.le.s32.totalorder 1, %s16
      %p225 = scmp.lt.s32.totalorder %s16, 5
      %p226 = pnand %p224, %p225
      %p227 = pneg %p226
      // Predicated region
      $region41: #{inte_ae_forward.1} parent=5 // pred_check
        _
      $region42: #{inte_ae_forward.1} parent=5 // pred_check_branch
        %229 = sbr.rel (%p226) target = $region44
      $region43: #{inte_ae_forward.1} parent=5 // pred_region
        %s230 = ssub.s32 %s16, 1
        // Predicated region
        $region45: #{inte_ae_forward.1} parent=43 // pred_check
          %p231 = pneg %p147
        $region46: #{inte_ae_forward.1} parent=43 // pred_check_branch
          %233 = sbr.rel (%p231) target = $region48
        $region47: #{inte_ae_forward.1} parent=43 // pred_region
          %234 = dma.done [#allocation4], 16
        $region48: #{inte_ae_forward.1} parent=43 // pred_fallthru
          _
        %235 = sfence
        %s236 = smul.u32 8, %s21
        %p237 = scmp.lt.s32.totalorder %s236, 31
        %s238 = scalar_select %p237, %s236, 31
        %s239 = smul.addr %s238, 4
        %s240 = scalar_lea.vmem %s0, %s239
        %p241 = pneg %p42
        %p242 = pneg %p39
        %p243 = pneg %p63
        %p244 = pneg %p60
        %p245 = pneg %p84
        %p246 = pneg %p81
        %p247 = pneg %p105
        %p248 = pneg %p102
        %p249 = pneg %p126
        %p250 = pneg %p123
        %p251 = pneg %p147
        %p252 = pneg %p144
        %p253 = pneg %p173
        %p254 = pneg %p170
        %s255 = sand.u32 %s160, 1
        %s256 = scalar_lea.sflag [#allocation3], %s255
        %s257 = sand.u32 %s160, 1
        %s258 = smul.addr %s257, 32
        %s259 = scalar_lea.vmem [#allocation5], %s258
        %s260 = smul.u32 8, %s21
        %p261 = scmp.lt.s32.totalorder %s260, 31
        %s262 = scalar_select %p261, %s260, 31
        %s263 = smul.addr %s262, 4
        %s264 = scalar_lea.vmem %s0, %s263
        %s265 = smul.u32 8, %s21
        %s266 = smul.u32 8, %s21
        %v267 = vld [vmem:[%s264] sm:$0xf]
        %v268 = vld [vmem:[%s264 + $0x4] sm:$0xf]
        %v269 = vld [vmem:[%s264 + $0x8] sm:$0xf]
        %v270 = vld [vmem:[%s264 + $0xc] sm:$0xf]
        %v271 = vld [vmem:[%s264 + $0x10] sm:$0xf]
        %v272 = vld [vmem:[%s264 + $0x14] sm:$0xf]
        %v273 = vld [vmem:[%s264 + $0x18] sm:$0xf]
        %v274 = vld [vmem:[%s264 + $0x1c] sm:$0xf]
        %v275 = vld [vmem:[%s1] sm:$0xf]
        %v276 = vmul.f32 %v267, %v275
        %v277 = vmul.f32 %v268, %v275
        %v278 = vmul.f32 %v269, %v275
        %v279 = vmul.f32 %v270, %v275
        %v280 = vmul.f32 %v271, %v275
        %v281 = vmul.f32 %v272, %v275
        %v282 = vmul.f32 %v273, %v275
        %v283 = vmul.f32 %v274, %v275
        %vm284 = vcmask 519168
        %v285 = vsel %vm284, %v276, 0.0
        %v286 = vrot.slane %v285, 4
        %v287 = vadd.f32 %v285, %v286
        %v288 = vrot.slane %v287, 2
        %v289 = vadd.f32 %v287, %v288
        %v290 = vrot.slane %v289, 1
        %v291 = vadd.f32 %v289, %v290
        %v292 = vsel %vm284, %v277, 0.0
        %v293 = vrot.slane %v292, 4
        %v294 = vadd.f32 %v292, %v293
        %v295 = vrot.slane %v294, 2
        %v296 = vadd.f32 %v294, %v295
        %v297 = vrot.slane %v296, 1
        %v298 = vadd.f32 %v296, %v297
        %v299 = vsel %vm284, %v278, 0.0
        %v300 = vrot.slane %v299, 4
        %v301 = vadd.f32 %v299, %v300
        %v302 = vrot.slane %v301, 2
        %v303 = vadd.f32 %v301, %v302
        %v304 = vrot.slane %v303, 1
        %v305 = vadd.f32 %v303, %v304
        %v306 = vsel %vm284, %v279, 0.0
        %v307 = vrot.slane %v306, 4
        %v308 = vadd.f32 %v306, %v307
        %v309 = vrot.slane %v308, 2
        %v310 = vadd.f32 %v308, %v309
        %v311 = vrot.slane %v310, 1
        %v312 = vadd.f32 %v310, %v311
        %v313 = vsel %vm284, %v280, 0.0
        %v314 = vrot.slane %v313, 4
        %v315 = vadd.f32 %v313, %v314
        %v316 = vrot.slane %v315, 2
        %v317 = vadd.f32 %v315, %v316
        %v318 = vrot.slane %v317, 1
        %v319 = vadd.f32 %v317, %v318
        %v320 = vsel %vm284, %v281, 0.0
        %v321 = vrot.slane %v320, 4
        %v322 = vadd.f32 %v320, %v321
        %v323 = vrot.slane %v322, 2
        %v324 = vadd.f32 %v322, %v323
        %v325 = vrot.slane %v324, 1
        %v326 = vadd.f32 %v324, %v325
        %v327 = vsel %vm284, %v282, 0.0
        %v328 = vrot.slane %v327, 4
        %v329 = vadd.f32 %v327, %v328
        %v330 = vrot.slane %v329, 2
        %v331 = vadd.f32 %v329, %v330
        %v332 = vrot.slane %v331, 1
        %v333 = vadd.f32 %v331, %v332
        %v334 = vsel %vm284, %v283, 0.0
        %v335 = vrot.slane %v334, 4
        %v336 = vadd.f32 %v334, %v335
        %v337 = vrot.slane %v336, 2
        %v338 = vadd.f32 %v336, %v337
        %v339 = vrot.slane %v338, 1
        %v340 = vadd.f32 %v338, %v339
        %v341 = vld [vmem:[%s3] sm:$0xff]
        %v342 = vld [vmem:[%s3 + $0x8] sm:$0xff]
        %v343 = vld [vmem:[%s3 + $0x10] sm:$0xff]
        %v344 = vld [vmem:[%s3 + $0x18] sm:$0xff]
        %v345 = vld [vmem:[%s3 + $0x20] sm:$0xff]
        %v346 = vld [vmem:[%s3 + $0x28] sm:$0xff]
        %v347 = vld [vmem:[%s3 + $0x30] sm:$0xff]
        %v348 = vld [vmem:[%s3 + $0x38] sm:$0xff]
        %s349 = sld [smem:[#allocation2]]
        %v350 = vstv %s349
        %vm359 = vcmask 1041409
        %v360 = vsel %vm359, %v298, %v291
        %vm361 = vcmask 1042434
        %v362 = vsel %vm361, %v305, %v360
        %vm363 = vcmask 1043459
        %v364 = vsel %vm363, %v312, %v362
        %vm365 = vcmask 1044484
        %v366 = vsel %vm365, %v319, %v364
        %vm367 = vcmask 1045509
        %v368 = vsel %vm367, %v326, %v366
        %vm369 = vcmask 1046534
        %v370 = vsel %vm369, %v333, %v368
        %vm371 = vcmask 1047559
        %v372 = vsel %vm371, %v340, %v370
        %vm373 = vcmask 523264
        %v374 = vsel %vm373, %v372, 0
        %376 = vmatprep.subr.mxu0 0.0
        %v377 = vand.u32 %v341, 4294901760
        %378 = vmatpush1.msra.mxu0 %v377
        %379 = vmatprep.subr.mxu0 0.0
        %v380 = vand.u32 %v342, 4294901760
        %381 = vmatpush1.msra.mxu0 %v380
        %382 = vmatprep.subr.mxu0 0.0
        %v383 = vand.u32 %v343, 4294901760
        %384 = vmatpush1.msra.mxu0 %v383
        %385 = vmatprep.subr.mxu0 0.0
        %v386 = vand.u32 %v344, 4294901760
        %387 = vmatpush1.msra.mxu0 %v386
        %388 = vmatprep.subr.mxu0 0.0
        %v389 = vand.u32 %v345, 4294901760
        %390 = vmatpush1.msra.mxu0 %v389
        %391 = vmatprep.subr.mxu0 0.0
        %v392 = vand.u32 %v346, 4294901760
        %393 = vmatpush1.msra.mxu0 %v392
        %394 = vmatprep.subr.mxu0 0.0
        %v395 = vand.u32 %v347, 4294901760
        %396 = vmatpush1.msra.mxu0 %v395
        %397 = vmatprep.subr.mxu0 0.0
        %v398 = vand.u32 %v348, 4294901760
        %399 = vmatpush1.msra.mxu0 %v398
        %400 = vmatprep.subr.mxu0 0.0
        %401 = vmatpush1.msra.mxu0 0.0
        %402 = vmatprep.subr.mxu0 0.0
        %403 = vmatpush1.msra.mxu0 0.0
        %404 = vmatprep.subr.mxu0 0.0
        %405 = vmatpush1.msra.mxu0 0.0
        %406 = vmatprep.subr.mxu0 0.0
        %407 = vmatpush1.msra.mxu0 0.0
        %408 = vmatprep.subr.mxu0 0.0
        %409 = vmatpush1.msra.mxu0 0.0
        %410 = vmatprep.subr.mxu0 0.0
        %411 = vmatpush1.msra.mxu0 0.0
        %412 = vmatprep.subr.mxu0 0.0
        %413 = vmatpush1.msra.mxu0 0.0
        %414 = vmatprep.subr.mxu0 0.0
        %415 = vmatpush1.msra.mxu0 0.0
        %416 = vmatprep.subr.mxu0 0.0
        %417 = vmatpush1.msra.mxu0 0.0
        %418 = vmatprep.subr.mxu0 0.0
        %419 = vmatpush1.msra.mxu0 0.0
        %420 = vmatprep.subr.mxu0 0.0
        %421 = vmatpush1.msra.mxu0 0.0
        %422 = vmatprep.subr.mxu0 0.0
        %423 = vmatpush1.msra.mxu0 0.0
        %424 = vmatprep.subr.mxu0 0.0
        %425 = vmatpush1.msra.mxu0 0.0
        %426 = vmatprep.subr.mxu0 0.0
        %427 = vmatpush1.msra.mxu0 0.0
        %428 = vmatprep.subr.mxu0 0.0
        %429 = vmatpush1.msra.mxu0 0.0
        %430 = vmatprep.subr.mxu0 0.0
        %431 = vmatpush1.msra.mxu0 0.0
        %432 = vmatprep.subr.mxu0 0.0
        %433 = vmatpush1.msra.mxu0 0.0
        %434 = vmatprep.subr.mxu0 0.0
        %435 = vmatpush1.msra.mxu0 0.0
        %436 = vmatprep.subr.mxu0 0.0
        %437 = vmatpush1.msra.mxu0 0.0
        %438 = vmatprep.subr.mxu0 0.0
        %439 = vmatpush1.msra.mxu0 0.0
        %440 = vmatprep.subr.mxu0 0.0
        %441 = vmatpush1.msra.mxu0 0.0
        %442 = vmatprep.subr.mxu0 0.0
        %443 = vmatpush1.msra.mxu0 0.0
        %444 = vmatprep.subr.mxu0 0.0
        %445 = vmatpush1.msra.mxu0 0.0
        %446 = vmatprep.subr.mxu0 0.0
        %447 = vmatpush1.msra.mxu0 0.0
        %448 = vmatprep.mubr.f32.mxu0 0.0
        %v449 = vand.u32 %v374, 4294901760
        %v450 = vsub.f32 %v374, %v449
        %v451 = vand.u32 %v450, 4294901760
        %v452 = vsub.f32 %v450, %v451
        %v453 = vand.u32 %v452, 4294901760
        %454 = vmatmul.mubr.f32.gmra.mrb[0].mxu0 %v453
        %v455 = vpop.f32.mrb[0].mxu0
        %v456 = vadd.f32 %v350, %v455
        %v457 = vpop.f32.mrb[0].mxu0
        %458 = vdwg.mxu0
        %459 = vmatprep.subr.mxu0 0.0
        %v460 = vand.u32 %v341, 4294901760
        %v461 = vsub.f32 %v341, %v460
        %v462 = vand.u32 %v461, 4294901760
        %v463 = vsub.f32 %v461, %v462
        %v464 = vand.u32 %v463, 4294901760
        %465 = vmatpush1.msra.mxu0 %v464
        %466 = vmatprep.subr.mxu0 0.0
        %v467 = vand.u32 %v342, 4294901760
        %v468 = vsub.f32 %v342, %v467
        %v469 = vand.u32 %v468, 4294901760
        %v470 = vsub.f32 %v468, %v469
        %v471 = vand.u32 %v470, 4294901760
        %472 = vmatpush1.msra.mxu0 %v471
        %473 = vmatprep.subr.mxu0 0.0
        %v474 = vand.u32 %v343, 4294901760
        %v475 = vsub.f32 %v343, %v474
        %v476 = vand.u32 %v475, 4294901760
        %v477 = vsub.f32 %v475, %v476
        %v478 = vand.u32 %v477, 4294901760
        %479 = vmatpush1.msra.mxu0 %v478
        %480 = vmatprep.subr.mxu0 0.0
        %v481 = vand.u32 %v344, 4294901760
        %v482 = vsub.f32 %v344, %v481
        %v483 = vand.u32 %v482, 4294901760
        %v484 = vsub.f32 %v482, %v483
        %v485 = vand.u32 %v484, 4294901760
        %486 = vmatpush1.msra.mxu0 %v485
        %487 = vmatprep.subr.mxu0 0.0
        %v488 = vand.u32 %v345, 4294901760
        %v489 = vsub.f32 %v345, %v488
        %v490 = vand.u32 %v489, 4294901760
        %v491 = vsub.f32 %v489, %v490
        %v492 = vand.u32 %v491, 4294901760
        %493 = vmatpush1.msra.mxu0 %v492
        %494 = vmatprep.subr.mxu0 0.0
        %v495 = vand.u32 %v346, 4294901760
        %v496 = vsub.f32 %v346, %v495
        %v497 = vand.u32 %v496, 4294901760
        %v498 = vsub.f32 %v496, %v497
        %v499 = vand.u32 %v498, 4294901760
        %500 = vmatpush1.msra.mxu0 %v499
        %501 = vmatprep.subr.mxu0 0.0
        %v502 = vand.u32 %v347, 4294901760
        %v503 = vsub.f32 %v347, %v502
        %v504 = vand.u32 %v503, 4294901760
        %v505 = vsub.f32 %v503, %v504
        %v506 = vand.u32 %v505, 4294901760
        %507 = vmatpush1.msra.mxu0 %v506
        %508 = vmatprep.subr.mxu0 0.0
        %v509 = vand.u32 %v348, 4294901760
        %v510 = vsub.f32 %v348, %v509
        %v511 = vand.u32 %v510, 4294901760
        %v512 = vsub.f32 %v510, %v511
        %v513 = vand.u32 %v512, 4294901760
        %514 = vmatpush1.msra.mxu0 %v513
        %515 = vmatprep.subr.mxu0 0.0
        %516 = vmatpush1.msra.mxu0 0.0
        %517 = vmatprep.subr.mxu0 0.0
        %518 = vmatpush1.msra.mxu0 0.0
        %519 = vmatprep.subr.mxu0 0.0
        %520 = vmatpush1.msra.mxu0 0.0
        %521 = vmatprep.subr.mxu0 0.0
        %522 = vmatpush1.msra.mxu0 0.0
        %523 = vmatprep.subr.mxu0 0.0
        %524 = vmatpush1.msra.mxu0 0.0
        %525 = vmatprep.subr.mxu0 0.0
        %526 = vmatpush1.msra.mxu0 0.0
        %527 = vmatprep.subr.mxu0 0.0
        %528 = vmatpush1.msra.mxu0 0.0
        %529 = vmatprep.subr.mxu0 0.0
        %530 = vmatpush1.msra.mxu0 0.0
        %531 = vmatprep.subr.mxu0 0.0
        %532 = vmatpush1.msra.mxu0 0.0
        %533 = vmatprep.subr.mxu0 0.0
        %534 = vmatpush1.msra.mxu0 0.0
        %535 = vmatprep.subr.mxu0 0.0
        %536 = vmatpush1.msra.mxu0 0.0
        %537 = vmatprep.subr.mxu0 0.0
        %538 = vmatpush1.msra.mxu0 0.0
        %539 = vmatprep.subr.mxu0 0.0
        %540 = vmatpush1.msra.mxu0 0.0
        %541 = vmatprep.subr.mxu0 0.0
        %542 = vmatpush1.msra.mxu0 0.0
        %543 = vmatprep.subr.mxu0 0.0
        %544 = vmatpush1.msra.mxu0 0.0
        %545 = vmatprep.subr.mxu0 0.0
        %546 = vmatpush1.msra.mxu0 0.0
        %547 = vmatprep.subr.mxu0 0.0
        %548 = vmatpush1.msra.mxu0 0.0
        %549 = vmatprep.subr.mxu0 0.0
        %550 = vmatpush1.msra.mxu0 0.0
        %551 = vmatprep.subr.mxu0 0.0
        %552 = vmatpush1.msra.mxu0 0.0
        %553 = vmatprep.subr.mxu0 0.0
        %554 = vmatpush1.msra.mxu0 0.0
        %555 = vmatprep.subr.mxu0 0.0
        %556 = vmatpush1.msra.mxu0 0.0
        %557 = vmatprep.subr.mxu0 0.0
        %558 = vmatpush1.msra.mxu0 0.0
        %559 = vmatprep.subr.mxu0 0.0
        %560 = vmatpush1.msra.mxu0 0.0
        %561 = vmatprep.subr.mxu0 0.0
        %562 = vmatpush1.msra.mxu0 0.0
        %563 = vmatprep.mubr.f32.mxu0 0.0
        %v564 = vand.u32 %v374, 4294901760
        %565 = vmatmul.mubr.f32.gmra.mrb[0].mxu0 %v564
        %v566 = vpop.f32.mrb[0].mxu0
        %v567 = vadd.f32 %v456, %v566
        %v568 = vpop.f32.mrb[0].mxu0
        %569 = vdwg.mxu0
        %570 = vmatprep.subr.mxu0 0.0
        %v571 = vand.u32 %v341, 4294901760
        %v572 = vsub.f32 %v341, %v571
        %573 = vmatpush1.msra.mxu0 %v572
        %574 = vmatprep.subr.mxu0 0.0
        %v575 = vand.u32 %v342, 4294901760
        %v576 = vsub.f32 %v342, %v575
        %577 = vmatpush1.msra.mxu0 %v576
        %578 = vmatprep.subr.mxu0 0.0
        %v579 = vand.u32 %v343, 4294901760
        %v580 = vsub.f32 %v343, %v579
        %581 = vmatpush1.msra.mxu0 %v580
        %582 = vmatprep.subr.mxu0 0.0
        %v583 = vand.u32 %v344, 4294901760
        %v584 = vsub.f32 %v344, %v583
        %585 = vmatpush1.msra.mxu0 %v584
        %586 = vmatprep.subr.mxu0 0.0
        %v587 = vand.u32 %v345, 4294901760
        %v588 = vsub.f32 %v345, %v587
        %589 = vmatpush1.msra.mxu0 %v588
        %590 = vmatprep.subr.mxu0 0.0
        %v591 = vand.u32 %v346, 4294901760
        %v592 = vsub.f32 %v346, %v591
        %593 = vmatpush1.msra.mxu0 %v592
        %594 = vmatprep.subr.mxu0 0.0
        %v595 = vand.u32 %v347, 4294901760
        %v596 = vsub.f32 %v347, %v595
        %597 = vmatpush1.msra.mxu0 %v596
        %598 = vmatprep.subr.mxu0 0.0
        %v599 = vand.u32 %v348, 4294901760
        %v600 = vsub.f32 %v348, %v599
        %601 = vmatpush1.msra.mxu0 %v600
        %602 = vmatprep.subr.mxu0 0.0
        %603 = vmatpush1.msra.mxu0 0.0
        %604 = vmatprep.subr.mxu0 0.0
        %605 = vmatpush1.msra.mxu0 0.0
        %606 = vmatprep.subr.mxu0 0.0
        %607 = vmatpush1.msra.mxu0 0.0
        %608 = vmatprep.subr.mxu0 0.0
        %609 = vmatpush1.msra.mxu0 0.0
        %610 = vmatprep.subr.mxu0 0.0
        %611 = vmatpush1.msra.mxu0 0.0
        %612 = vmatprep.subr.mxu0 0.0
        %613 = vmatpush1.msra.mxu0 0.0
        %614 = vmatprep.subr.mxu0 0.0
        %615 = vmatpush1.msra.mxu0 0.0
        %616 = vmatprep.subr.mxu0 0.0
        %617 = vmatpush1.msra.mxu0 0.0
        %618 = vmatprep.subr.mxu0 0.0
        %619 = vmatpush1.msra.mxu0 0.0
        %620 = vmatprep.subr.mxu0 0.0
        %621 = vmatpush1.msra.mxu0 0.0
        %622 = vmatprep.subr.mxu0 0.0
        %623 = vmatpush1.msra.mxu0 0.0
        %624 = vmatprep.subr.mxu0 0.0
        %625 = vmatpush1.msra.mxu0 0.0
        %626 = vmatprep.subr.mxu0 0.0
        %627 = vmatpush1.msra.mxu0 0.0
        %628 = vmatprep.subr.mxu0 0.0
        %629 = vmatpush1.msra.mxu0 0.0
        %630 = vmatprep.subr.mxu0 0.0
        %631 = vmatpush1.msra.mxu0 0.0
        %632 = vmatprep.subr.mxu0 0.0
        %633 = vmatpush1.msra.mxu0 0.0
        %634 = vmatprep.subr.mxu0 0.0
        %635 = vmatpush1.msra.mxu0 0.0
        %636 = vmatprep.subr.mxu0 0.0
        %637 = vmatpush1.msra.mxu0 0.0
        %638 = vmatprep.subr.mxu0 0.0
        %639 = vmatpush1.msra.mxu0 0.0
        %640 = vmatprep.subr.mxu0 0.0
        %641 = vmatpush1.msra.mxu0 0.0
        %642 = vmatprep.subr.mxu0 0.0
        %643 = vmatpush1.msra.mxu0 0.0
        %644 = vmatprep.subr.mxu0 0.0
        %645 = vmatpush1.msra.mxu0 0.0
        %646 = vmatprep.subr.mxu0 0.0
        %647 = vmatpush1.msra.mxu0 0.0
        %648 = vmatprep.subr.mxu0 0.0
        %649 = vmatpush1.msra.mxu0 0.0
        %650 = vmatprep.mubr.f32.mxu0 0.0
        %v651 = vand.u32 %v374, 4294901760
        %v652 = vsub.f32 %v374, %v651
        %653 = vmatmul.mubr.f32.gmra.mrb[0].mxu0 %v652
        %v654 = vpop.f32.mrb[0].mxu0
        %v655 = vadd.f32 %v567, %v654
        %v656 = vpop.f32.mrb[0].mxu0
        %657 = vdwg.mxu0
        %658 = vmatprep.subr.mxu0 0.0
        %v659 = vand.u32 %v341, 4294901760
        %660 = vmatpush1.msra.mxu0 %v659
        %661 = vmatprep.subr.mxu0 0.0
        %v662 = vand.u32 %v342, 4294901760
        %663 = vmatpush1.msra.mxu0 %v662
        %664 = vmatprep.subr.mxu0 0.0
        %v665 = vand.u32 %v343, 4294901760
        %666 = vmatpush1.msra.mxu0 %v665
        %667 = vmatprep.subr.mxu0 0.0
        %v668 = vand.u32 %v344, 4294901760
        %669 = vmatpush1.msra.mxu0 %v668
        %670 = vmatprep.subr.mxu0 0.0
        %v671 = vand.u32 %v345, 4294901760
        %672 = vmatpush1.msra.mxu0 %v671
        %673 = vmatprep.subr.mxu0 0.0
        %v674 = vand.u32 %v346, 4294901760
        %675 = vmatpush1.msra.mxu0 %v674
        %676 = vmatprep.subr.mxu0 0.0
        %v677 = vand.u32 %v347, 4294901760
        %678 = vmatpush1.msra.mxu0 %v677
        %679 = vmatprep.subr.mxu0 0.0
        %v680 = vand.u32 %v348, 4294901760
        %681 = vmatpush1.msra.mxu0 %v680
        %682 = vmatprep.subr.mxu0 0.0
        %683 = vmatpush1.msra.mxu0 0.0
        %684 = vmatprep.subr.mxu0 0.0
        %685 = vmatpush1.msra.mxu0 0.0
        %686 = vmatprep.subr.mxu0 0.0
        %687 = vmatpush1.msra.mxu0 0.0
        %688 = vmatprep.subr.mxu0 0.0
        %689 = vmatpush1.msra.mxu0 0.0
        %690 = vmatprep.subr.mxu0 0.0
        %691 = vmatpush1.msra.mxu0 0.0
        %692 = vmatprep.subr.mxu0 0.0
        %693 = vmatpush1.msra.mxu0 0.0
        %694 = vmatprep.subr.mxu0 0.0
        %695 = vmatpush1.msra.mxu0 0.0
        %696 = vmatprep.subr.mxu0 0.0
        %697 = vmatpush1.msra.mxu0 0.0
        %698 = vmatprep.subr.mxu0 0.0
        %699 = vmatpush1.msra.mxu0 0.0
        %700 = vmatprep.subr.mxu0 0.0
        %701 = vmatpush1.msra.mxu0 0.0
        %702 = vmatprep.subr.mxu0 0.0
        %703 = vmatpush1.msra.mxu0 0.0
        %704 = vmatprep.subr.mxu0 0.0
        %705 = vmatpush1.msra.mxu0 0.0
        %706 = vmatprep.subr.mxu0 0.0
        %707 = vmatpush1.msra.mxu0 0.0
        %708 = vmatprep.subr.mxu0 0.0
        %709 = vmatpush1.msra.mxu0 0.0
        %710 = vmatprep.subr.mxu0 0.0
        %711 = vmatpush1.msra.mxu0 0.0
        %712 = vmatprep.subr.mxu0 0.0
        %713 = vmatpush1.msra.mxu0 0.0
        %714 = vmatprep.subr.mxu0 0.0
        %715 = vmatpush1.msra.mxu0 0.0
        %716 = vmatprep.subr.mxu0 0.0
        %717 = vmatpush1.msra.mxu0 0.0
        %718 = vmatprep.subr.mxu0 0.0
        %719 = vmatpush1.msra.mxu0 0.0
        %720 = vmatprep.subr.mxu0 0.0
        %721 = vmatpush1.msra.mxu0 0.0
        %722 = vmatprep.subr.mxu0 0.0
        %723 = vmatpush1.msra.mxu0 0.0
        %724 = vmatprep.subr.mxu0 0.0
        %725 = vmatpush1.msra.mxu0 0.0
        %726 = vmatprep.subr.mxu0 0.0
        %727 = vmatpush1.msra.mxu0 0.0
        %728 = vmatprep.subr.mxu0 0.0
        %729 = vmatpush1.msra.mxu0 0.0
        %730 = vmatprep.mubr.f32.mxu0 0.0
        %v731 = vand.u32 %v374, 4294901760
        %v732 = vsub.f32 %v374, %v731
        %v733 = vand.u32 %v732, 4294901760
        %734 = vmatmul.mubr.f32.gmra.mrb[0].mxu0 %v733
        %v735 = vpop.f32.mrb[0].mxu0
        %v736 = vadd.f32 %v655, %v735
        %v737 = vpop.f32.mrb[0].mxu0
        %738 = vdwg.mxu0
        %739 = vmatprep.subr.mxu0 0.0
        %v740 = vand.u32 %v341, 4294901760
        %v741 = vsub.f32 %v341, %v740
        %v742 = vand.u32 %v741, 4294901760
        %743 = vmatpush1.msra.mxu0 %v742
        %744 = vmatprep.subr.mxu0 0.0
        %v745 = vand.u32 %v342, 4294901760
        %v746 = vsub.f32 %v342, %v745
        %v747 = vand.u32 %v746, 4294901760
        %748 = vmatpush1.msra.mxu0 %v747
        %749 = vmatprep.subr.mxu0 0.0
        %v750 = vand.u32 %v343, 4294901760
        %v751 = vsub.f32 %v343, %v750
        %v752 = vand.u32 %v751, 4294901760
        %753 = vmatpush1.msra.mxu0 %v752
        %754 = vmatprep.subr.mxu0 0.0
        %v755 = vand.u32 %v344, 4294901760
        %v756 = vsub.f32 %v344, %v755
        %v757 = vand.u32 %v756, 4294901760
        %758 = vmatpush1.msra.mxu0 %v757
        %759 = vmatprep.subr.mxu0 0.0
        %v760 = vand.u32 %v345, 4294901760
        %v761 = vsub.f32 %v345, %v760
        %v762 = vand.u32 %v761, 4294901760
        %763 = vmatpush1.msra.mxu0 %v762
        %764 = vmatprep.subr.mxu0 0.0
        %v765 = vand.u32 %v346, 4294901760
        %v766 = vsub.f32 %v346, %v765
        %v767 = vand.u32 %v766, 4294901760
        %768 = vmatpush1.msra.mxu0 %v767
        %769 = vmatprep.subr.mxu0 0.0
        %v770 = vand.u32 %v347, 4294901760
        %v771 = vsub.f32 %v347, %v770
        %v772 = vand.u32 %v771, 4294901760
        %773 = vmatpush1.msra.mxu0 %v772
        %774 = vmatprep.subr.mxu0 0.0
        %v775 = vand.u32 %v348, 4294901760
        %v776 = vsub.f32 %v348, %v775
        %v777 = vand.u32 %v776, 4294901760
        %778 = vmatpush1.msra.mxu0 %v777
        %779 = vmatprep.subr.mxu0 0.0
        %780 = vmatpush1.msra.mxu0 0.0
        %781 = vmatprep.subr.mxu0 0.0
        %782 = vmatpush1.msra.mxu0 0.0
        %783 = vmatprep.subr.mxu0 0.0
        %784 = vmatpush1.msra.mxu0 0.0
        %785 = vmatprep.subr.mxu0 0.0
        %786 = vmatpush1.msra.mxu0 0.0
        %787 = vmatprep.subr.mxu0 0.0
        %788 = vmatpush1.msra.mxu0 0.0
        %789 = vmatprep.subr.mxu0 0.0
        %790 = vmatpush1.msra.mxu0 0.0
        %791 = vmatprep.subr.mxu0 0.0
        %792 = vmatpush1.msra.mxu0 0.0
        %793 = vmatprep.subr.mxu0 0.0
        %794 = vmatpush1.msra.mxu0 0.0
        %795 = vmatprep.subr.mxu0 0.0
        %796 = vmatpush1.msra.mxu0 0.0
        %797 = vmatprep.subr.mxu0 0.0
        %798 = vmatpush1.msra.mxu0 0.0
        %799 = vmatprep.subr.mxu0 0.0
        %800 = vmatpush1.msra.mxu0 0.0
        %801 = vmatprep.subr.mxu0 0.0
        %802 = vmatpush1.msra.mxu0 0.0
        %803 = vmatprep.subr.mxu0 0.0
        %804 = vmatpush1.msra.mxu0 0.0
        %805 = vmatprep.subr.mxu0 0.0
        %806 = vmatpush1.msra.mxu0 0.0
        %807 = vmatprep.subr.mxu0 0.0
        %808 = vmatpush1.msra.mxu0 0.0
        %809 = vmatprep.subr.mxu0 0.0
        %810 = vmatpush1.msra.mxu0 0.0
        %811 = vmatprep.subr.mxu0 0.0
        %812 = vmatpush1.msra.mxu0 0.0
        %813 = vmatprep.subr.mxu0 0.0
        %814 = vmatpush1.msra.mxu0 0.0
        %815 = vmatprep.subr.mxu0 0.0
        %816 = vmatpush1.msra.mxu0 0.0
        %817 = vmatprep.subr.mxu0 0.0
        %818 = vmatpush1.msra.mxu0 0.0
        %819 = vmatprep.subr.mxu0 0.0
        %820 = vmatpush1.msra.mxu0 0.0
        %821 = vmatprep.subr.mxu0 0.0
        %822 = vmatpush1.msra.mxu0 0.0
        %823 = vmatprep.subr.mxu0 0.0
        %824 = vmatpush1.msra.mxu0 0.0
        %825 = vmatprep.subr.mxu0 0.0
        %826 = vmatpush1.msra.mxu0 0.0
        %827 = vmatprep.mubr.f32.mxu0 0.0
        %v828 = vand.u32 %v374, 4294901760
        %829 = vmatmul.mubr.f32.gmra.mrb[0].mxu0 %v828
        %v830 = vpop.f32.mrb[0].mxu0
        %v831 = vadd.f32 %v736, %v830
        %v832 = vpop.f32.mrb[0].mxu0
        %833 = vdwg.mxu0
        %834 = vmatprep.subr.mxu0 0.0
        %v835 = vand.u32 %v341, 4294901760
        %836 = vmatpush1.msra.mxu0 %v835
        %837 = vmatprep.subr.mxu0 0.0
        %v838 = vand.u32 %v342, 4294901760
        %839 = vmatpush1.msra.mxu0 %v838
        %840 = vmatprep.subr.mxu0 0.0
        %v841 = vand.u32 %v343, 4294901760
        %842 = vmatpush1.msra.mxu0 %v841
        %843 = vmatprep.subr.mxu0 0.0
        %v844 = vand.u32 %v344, 4294901760
        %845 = vmatpush1.msra.mxu0 %v844
        %846 = vmatprep.subr.mxu0 0.0
        %v847 = vand.u32 %v345, 4294901760
        %848 = vmatpush1.msra.mxu0 %v847
        %849 = vmatprep.subr.mxu0 0.0
        %v850 = vand.u32 %v346, 4294901760
        %851 = vmatpush1.msra.mxu0 %v850
        %852 = vmatprep.subr.mxu0 0.0
        %v853 = vand.u32 %v347, 4294901760
        %854 = vmatpush1.msra.mxu0 %v853
        %855 = vmatprep.subr.mxu0 0.0
        %v856 = vand.u32 %v348, 4294901760
        %857 = vmatpush1.msra.mxu0 %v856
        %858 = vmatprep.subr.mxu0 0.0
        %859 = vmatpush1.msra.mxu0 0.0
        %860 = vmatprep.subr.mxu0 0.0
        %861 = vmatpush1.msra.mxu0 0.0
        %862 = vmatprep.subr.mxu0 0.0
        %863 = vmatpush1.msra.mxu0 0.0
        %864 = vmatprep.subr.mxu0 0.0
        %865 = vmatpush1.msra.mxu0 0.0
        %866 = vmatprep.subr.mxu0 0.0
        %867 = vmatpush1.msra.mxu0 0.0
        %868 = vmatprep.subr.mxu0 0.0
        %869 = vmatpush1.msra.mxu0 0.0
        %870 = vmatprep.subr.mxu0 0.0
        %871 = vmatpush1.msra.mxu0 0.0
        %872 = vmatprep.subr.mxu0 0.0
        %873 = vmatpush1.msra.mxu0 0.0
        %874 = vmatprep.subr.mxu0 0.0
        %875 = vmatpush1.msra.mxu0 0.0
        %876 = vmatprep.subr.mxu0 0.0
        %877 = vmatpush1.msra.mxu0 0.0
        %878 = vmatprep.subr.mxu0 0.0
        %879 = vmatpush1.msra.mxu0 0.0
        %880 = vmatprep.subr.mxu0 0.0
        %881 = vmatpush1.msra.mxu0 0.0
        %882 = vmatprep.subr.mxu0 0.0
        %883 = vmatpush1.msra.mxu0 0.0
        %884 = vmatprep.subr.mxu0 0.0
        %885 = vmatpush1.msra.mxu0 0.0
        %886 = vmatprep.subr.mxu0 0.0
        %887 = vmatpush1.msra.mxu0 0.0
        %888 = vmatprep.subr.mxu0 0.0
        %889 = vmatpush1.msra.mxu0 0.0
        %890 = vmatprep.subr.mxu0 0.0
        %891 = vmatpush1.msra.mxu0 0.0
        %892 = vmatprep.subr.mxu0 0.0
        %893 = vmatpush1.msra.mxu0 0.0
        %894 = vmatprep.subr.mxu0 0.0
        %895 = vmatpush1.msra.mxu0 0.0
        %896 = vmatprep.subr.mxu0 0.0
        %897 = vmatpush1.msra.mxu0 0.0
        %898 = vmatprep.subr.mxu0 0.0
        %899 = vmatpush1.msra.mxu0 0.0
        %900 = vmatprep.subr.mxu0 0.0
        %901 = vmatpush1.msra.mxu0 0.0
        %902 = vmatprep.subr.mxu0 0.0
        %903 = vmatpush1.msra.mxu0 0.0
        %904 = vmatprep.subr.mxu0 0.0
        %905 = vmatpush1.msra.mxu0 0.0
        %906 = vmatprep.mubr.f32.mxu0 0.0
        %v907 = vand.u32 %v374, 4294901760
        %908 = vmatmul.mubr.f32.gmra.mrb[0].mxu0 %v907
        %v909 = vpop.f32.mrb[0].mxu0
        %v910 = vadd.f32 %v831, %v909
        %v911 = vpop.f32.mrb[0].mxu0
        %912 = vdwg.mxu0
        %v913 = vld [vmem:[%s4] sm:$0xff]
        %v914 = vld [vmem:[%s4 + $0x8] sm:$0xff]
        %vm915 = vcmask 130048
        %v917 = vsel %vm915, %v910, 0
        %919 = vmatprep.subr.mxu0 0.0
        %v920 = vand.u32 %v913, 4294901760
        %921 = vmatpush1.msra.mxu0 %v920
        %922 = vmatprep.subr.mxu0 0.0
        %v923 = vand.u32 %v914, 4294901760
        %924 = vmatpush1.msra.mxu0 %v923
        %925 = vmatprep.subr.mxu0 0.0
        %926 = vmatpush1.msra.mxu0 0.0
        %927 = vmatprep.subr.mxu0 0.0
        %928 = vmatpush1.msra.mxu0 0.0
        %929 = vmatprep.subr.mxu0 0.0
        %930 = vmatpush1.msra.mxu0 0.0
        %931 = vmatprep.subr.mxu0 0.0
        %932 = vmatpush1.msra.mxu0 0.0
        %933 = vmatprep.subr.mxu0 0.0
        %934 = vmatpush1.msra.mxu0 0.0
        %935 = vmatprep.subr.mxu0 0.0
        %936 = vmatpush1.msra.mxu0 0.0
        %937 = vmatprep.subr.mxu0 0.0
        %938 = vmatpush1.msra.mxu0 0.0
        %939 = vmatprep.subr.mxu0 0.0
        %940 = vmatpush1.msra.mxu0 0.0
        %941 = vmatprep.subr.mxu0 0.0
        %942 = vmatpush1.msra.mxu0 0.0
        %943 = vmatprep.subr.mxu0 0.0
        %944 = vmatpush1.msra.mxu0 0.0
        %945 = vmatprep.subr.mxu0 0.0
        %946 = vmatpush1.msra.mxu0 0.0
        %947 = vmatprep.subr.mxu0 0.0
        %948 = vmatpush1.msra.mxu0 0.0
        %949 = vmatprep.subr.mxu0 0.0
        %950 = vmatpush1.msra.mxu0 0.0
        %951 = vmatprep.subr.mxu0 0.0
        %952 = vmatpush1.msra.mxu0 0.0
        %953 = vmatprep.subr.mxu0 0.0
        %954 = vmatpush1.msra.mxu0 0.0
        %955 = vmatprep.subr.mxu0 0.0
        %956 = vmatpush1.msra.mxu0 0.0
        %957 = vmatprep.subr.mxu0 0.0
        %958 = vmatpush1.msra.mxu0 0.0
        %959 = vmatprep.subr.mxu0 0.0
        %960 = vmatpush1.msra.mxu0 0.0
        %961 = vmatprep.subr.mxu0 0.0
        %962 = vmatpush1.msra.mxu0 0.0
        %963 = vmatprep.subr.mxu0 0.0
        %964 = vmatpush1.msra.mxu0 0.0
        %965 = vmatprep.subr.mxu0 0.0
        %966 = vmatpush1.msra.mxu0 0.0
        %967 = vmatprep.subr.mxu0 0.0
        %968 = vmatpush1.msra.mxu0 0.0
        %969 = vmatprep.subr.mxu0 0.0
        %970 = vmatpush1.msra.mxu0 0.0
        %971 = vmatprep.subr.mxu0 0.0
        %972 = vmatpush1.msra.mxu0 0.0
        %973 = vmatprep.subr.mxu0 0.0
        %974 = vmatpush1.msra.mxu0 0.0
        %975 = vmatprep.subr.mxu0 0.0
        %976 = vmatpush1.msra.mxu0 0.0
        %977 = vmatprep.subr.mxu0 0.0
        %978 = vmatpush1.msra.mxu0 0.0
        %979 = vmatprep.subr.mxu0 0.0
        %980 = vmatpush1.msra.mxu0 0.0
        %981 = vmatprep.subr.mxu0 0.0
        %982 = vmatpush1.msra.mxu0 0.0
        %983 = vmatprep.subr.mxu0 0.0
        %984 = vmatpush1.msra.mxu0 0.0
        %985 = vmatprep.mubr.f32.mxu0 0.0
        %v986 = vand.u32 %v917, 4294901760
        %v987 = vsub.f32 %v917, %v986
        %v988 = vand.u32 %v987, 4294901760
        %v989 = vsub.f32 %v987, %v988
        %v990 = vand.u32 %v989, 4294901760
        %991 = vmatmul.mubr.f32.gmra.mrb[0].mxu0 %v990
        %v992 = vpop.f32.mrb[0].mxu0
        %v993 = vadd.f32 0.0, %v992
        %v994 = vpop.f32.mrb[0].mxu0
        %995 = vdwg.mxu0
        %996 = vmatprep.subr.mxu0 0.0
        %v997 = vand.u32 %v913, 4294901760
        %v998 = vsub.f32 %v913, %v997
        %v999 = vand.u32 %v998, 4294901760
        %v1000 = vsub.f32 %v998, %v999
        %v1001 = vand.u32 %v1000, 4294901760
        %1002 = vmatpush1.msra.mxu0 %v1001
        %1003 = vmatprep.subr.mxu0 0.0
        %v1004 = vand.u32 %v914, 4294901760
        %v1005 = vsub.f32 %v914, %v1004
        %v1006 = vand.u32 %v1005, 4294901760
        %v1007 = vsub.f32 %v1005, %v1006
        %v1008 = vand.u32 %v1007, 4294901760
        %1009 = vmatpush1.msra.mxu0 %v1008
        %1010 = vmatprep.subr.mxu0 0.0
        %1011 = vmatpush1.msra.mxu0 0.0
        %1012 = vmatprep.subr.mxu0 0.0
        %1013 = vmatpush1.msra.mxu0 0.0
        %1014 = vmatprep.subr.mxu0 0.0
        %1015 = vmatpush1.msra.mxu0 0.0
        %1016 = vmatprep.subr.mxu0 0.0
        %1017 = vmatpush1.msra.mxu0 0.0
        %1018 = vmatprep.subr.mxu0 0.0
        %1019 = vmatpush1.msra.mxu0 0.0
        %1020 = vmatprep.subr.mxu0 0.0
        %1021 = vmatpush1.msra.mxu0 0.0
        %1022 = vmatprep.subr.mxu0 0.0
        %1023 = vmatpush1.msra.mxu0 0.0
        %1024 = vmatprep.subr.mxu0 0.0
        %1025 = vmatpush1.msra.mxu0 0.0
        %1026 = vmatprep.subr.mxu0 0.0
        %1027 = vmatpush1.msra.mxu0 0.0
        %1028 = vmatprep.subr.mxu0 0.0
        %1029 = vmatpush1.msra.mxu0 0.0
        %1030 = vmatprep.subr.mxu0 0.0
        %1031 = vmatpush1.msra.mxu0 0.0
        %1032 = vmatprep.subr.mxu0 0.0
        %1033 = vmatpush1.msra.mxu0 0.0
        %1034 = vmatprep.subr.mxu0 0.0
        %1035 = vmatpush1.msra.mxu0 0.0
        %1036 = vmatprep.subr.mxu0 0.0
        %1037 = vmatpush1.msra.mxu0 0.0
        %1038 = vmatprep.subr.mxu0 0.0
        %1039 = vmatpush1.msra.mxu0 0.0
        %1040 = vmatprep.subr.mxu0 0.0
        %1041 = vmatpush1.msra.mxu0 0.0
        %1042 = vmatprep.subr.mxu0 0.0
        %1043 = vmatpush1.msra.mxu0 0.0
        %1044 = vmatprep.subr.mxu0 0.0
        %1045 = vmatpush1.msra.mxu0 0.0
        %1046 = vmatprep.subr.mxu0 0.0
        %1047 = vmatpush1.msra.mxu0 0.0
        %1048 = vmatprep.subr.mxu0 0.0
        %1049 = vmatpush1.msra.mxu0 0.0
        %1050 = vmatprep.subr.mxu0 0.0
        %1051 = vmatpush1.msra.mxu0 0.0
        %1052 = vmatprep.subr.mxu0 0.0
        %1053 = vmatpush1.msra.mxu0 0.0
        %1054 = vmatprep.subr.mxu0 0.0
        %1055 = vmatpush1.msra.mxu0 0.0
        %1056 = vmatprep.subr.mxu0 0.0
        %1057 = vmatpush1.msra.mxu0 0.0
        %1058 = vmatprep.subr.mxu0 0.0
        %1059 = vmatpush1.msra.mxu0 0.0
        %1060 = vmatprep.subr.mxu0 0.0
        %1061 = vmatpush1.msra.mxu0 0.0
        %1062 = vmatprep.subr.mxu0 0.0
        %1063 = vmatpush1.msra.mxu0 0.0
        %1064 = vmatprep.subr.mxu0 0.0
        %1065 = vmatpush1.msra.mxu0 0.0
        %1066 = vmatprep.subr.mxu0 0.0
        %1067 = vmatpush1.msra.mxu0 0.0
        %1068 = vmatprep.subr.mxu0 0.0
        %1069 = vmatpush1.msra.mxu0 0.0
        %1070 = vmatprep.mubr.f32.mxu0 0.0
        %v1071 = vand.u32 %v917, 4294901760
        %1072 = vmatmul.mubr.f32.gmra.mrb[0].mxu0 %v1071
        %v1073 = vpop.f32.mrb[0].mxu0
        %v1074 = vadd.f32 %v993, %v1073
        %v1075 = vpop.f32.mrb[0].mxu0
        %1076 = vdwg.mxu0
        %1077 = vmatprep.subr.mxu0 0.0
        %v1078 = vand.u32 %v913, 4294901760
        %v1079 = vsub.f32 %v913, %v1078
        %1080 = vmatpush1.msra.mxu0 %v1079
        %1081 = vmatprep.subr.mxu0 0.0
        %v1082 = vand.u32 %v914, 4294901760
        %v1083 = vsub.f32 %v914, %v1082
        %1084 = vmatpush1.msra.mxu0 %v1083
        %1085 = vmatprep.subr.mxu0 0.0
        %1086 = vmatpush1.msra.mxu0 0.0
        %1087 = vmatprep.subr.mxu0 0.0
        %1088 = vmatpush1.msra.mxu0 0.0
        %1089 = vmatprep.subr.mxu0 0.0
        %1090 = vmatpush1.msra.mxu0 0.0
        %1091 = vmatprep.subr.mxu0 0.0
        %1092 = vmatpush1.msra.mxu0 0.0
        %1093 = vmatprep.subr.mxu0 0.0
        %1094 = vmatpush1.msra.mxu0 0.0
        %1095 = vmatprep.subr.mxu0 0.0
        %1096 = vmatpush1.msra.mxu0 0.0
        %1097 = vmatprep.subr.mxu0 0.0
        %1098 = vmatpush1.msra.mxu0 0.0
        %1099 = vmatprep.subr.mxu0 0.0
        %1100 = vmatpush1.msra.mxu0 0.0
        %1101 = vmatprep.subr.mxu0 0.0
        %1102 = vmatpush1.msra.mxu0 0.0
        %1103 = vmatprep.subr.mxu0 0.0
        %1104 = vmatpush1.msra.mxu0 0.0
        %1105 = vmatprep.subr.mxu0 0.0
        %1106 = vmatpush1.msra.mxu0 0.0
        %1107 = vmatprep.subr.mxu0 0.0
        %1108 = vmatpush1.msra.mxu0 0.0
        %1109 = vmatprep.subr.mxu0 0.0
        %1110 = vmatpush1.msra.mxu0 0.0
        %1111 = vmatprep.subr.mxu0 0.0
        %1112 = vmatpush1.msra.mxu0 0.0
        %1113 = vmatprep.subr.mxu0 0.0
        %1114 = vmatpush1.msra.mxu0 0.0
        %1115 = vmatprep.subr.mxu0 0.0
        %1116 = vmatpush1.msra.mxu0 0.0
        %1117 = vmatprep.subr.mxu0 0.0
        %1118 = vmatpush1.msra.mxu0 0.0
        %1119 = vmatprep.subr.mxu0 0.0
        %1120 = vmatpush1.msra.mxu0 0.0
        %1121 = vmatprep.subr.mxu0 0.0
        %1122 = vmatpush1.msra.mxu0 0.0
        %1123 = vmatprep.subr.mxu0 0.0
        %1124 = vmatpush1.msra.mxu0 0.0
        %1125 = vmatprep.subr.mxu0 0.0
        %1126 = vmatpush1.msra.mxu0 0.0
        %1127 = vmatprep.subr.mxu0 0.0
        %1128 = vmatpush1.msra.mxu0 0.0
        %1129 = vmatprep.subr.mxu0 0.0
        %1130 = vmatpush1.msra.mxu0 0.0
        %1131 = vmatprep.subr.mxu0 0.0
        %1132 = vmatpush1.msra.mxu0 0.0
        %1133 = vmatprep.subr.mxu0 0.0
        %1134 = vmatpush1.msra.mxu0 0.0
        %1135 = vmatprep.subr.mxu0 0.0
        %1136 = vmatpush1.msra.mxu0 0.0
        %1137 = vmatprep.subr.mxu0 0.0
        %1138 = vmatpush1.msra.mxu0 0.0
        %1139 = vmatprep.subr.mxu0 0.0
        %1140 = vmatpush1.msra.mxu0 0.0
        %1141 = vmatprep.subr.mxu0 0.0
        %1142 = vmatpush1.msra.mxu0 0.0
        %1143 = vmatprep.subr.mxu0 0.0
        %1144 = vmatpush1.msra.mxu0 0.0
        %1145 = vmatprep.mubr.f32.mxu0 0.0
        %v1146 = vand.u32 %v917, 4294901760
        %v1147 = vsub.f32 %v917, %v1146
        %1148 = vmatmul.mubr.f32.gmra.mrb[0].mxu0 %v1147
        %v1149 = vpop.f32.mrb[0].mxu0
        %v1150 = vadd.f32 %v1074, %v1149
        %v1151 = vpop.f32.mrb[0].mxu0
        %1152 = vdwg.mxu0
        %1153 = vmatprep.subr.mxu0 0.0
        %v1154 = vand.u32 %v913, 4294901760
        %1155 = vmatpush1.msra.mxu0 %v1154
        %1156 = vmatprep.subr.mxu0 0.0
        %v1157 = vand.u32 %v914, 4294901760
        %1158 = vmatpush1.msra.mxu0 %v1157
        %1159 = vmatprep.subr.mxu0 0.0
        %1160 = vmatpush1.msra.mxu0 0.0
        %1161 = vmatprep.subr.mxu0 0.0
        %1162 = vmatpush1.msra.mxu0 0.0
        %1163 = vmatprep.subr.mxu0 0.0
        %1164 = vmatpush1.msra.mxu0 0.0
        %1165 = vmatprep.subr.mxu0 0.0
        %1166 = vmatpush1.msra.mxu0 0.0
        %1167 = vmatprep.subr.mxu0 0.0
        %1168 = vmatpush1.msra.mxu0 0.0
        %1169 = vmatprep.subr.mxu0 0.0
        %1170 = vmatpush1.msra.mxu0 0.0
        %1171 = vmatprep.subr.mxu0 0.0
        %1172 = vmatpush1.msra.mxu0 0.0
        %1173 = vmatprep.subr.mxu0 0.0
        %1174 = vmatpush1.msra.mxu0 0.0
        %1175 = vmatprep.subr.mxu0 0.0
        %1176 = vmatpush1.msra.mxu0 0.0
        %1177 = vmatprep.subr.mxu0 0.0
        %1178 = vmatpush1.msra.mxu0 0.0
        %1179 = vmatprep.subr.mxu0 0.0
        %1180 = vmatpush1.msra.mxu0 0.0
        %1181 = vmatprep.subr.mxu0 0.0
        %1182 = vmatpush1.msra.mxu0 0.0
        %1183 = vmatprep.subr.mxu0 0.0
        %1184 = vmatpush1.msra.mxu0 0.0
        %1185 = vmatprep.subr.mxu0 0.0
        %1186 = vmatpush1.msra.mxu0 0.0
        %1187 = vmatprep.subr.mxu0 0.0
        %1188 = vmatpush1.msra.mxu0 0.0
        %1189 = vmatprep.subr.mxu0 0.0
        %1190 = vmatpush1.msra.mxu0 0.0
        %1191 = vmatprep.subr.mxu0 0.0
        %1192 = vmatpush1.msra.mxu0 0.0
        %1193 = vmatprep.subr.mxu0 0.0
        %1194 = vmatpush1.msra.mxu0 0.0
        %1195 = vmatprep.subr.mxu0 0.0
        %1196 = vmatpush1.msra.mxu0 0.0
        %1197 = vmatprep.subr.mxu0 0.0
        %1198 = vmatpush1.msra.mxu0 0.0
        %1199 = vmatprep.subr.mxu0 0.0
        %1200 = vmatpush1.msra.mxu0 0.0
        %1201 = vmatprep.subr.mxu0 0.0
        %1202 = vmatpush1.msra.mxu0 0.0
        %1203 = vmatprep.subr.mxu0 0.0
        %1204 = vmatpush1.msra.mxu0 0.0
        %1205 = vmatprep.subr.mxu0 0.0
        %1206 = vmatpush1.msra.mxu0 0.0
        %1207 = vmatprep.subr.mxu0 0.0
        %1208 = vmatpush1.msra.mxu0 0.0
        %1209 = vmatprep.subr.mxu0 0.0
        %1210 = vmatpush1.msra.mxu0 0.0
        %1211 = vmatprep.subr.mxu0 0.0
        %1212 = vmatpush1.msra.mxu0 0.0
        %1213 = vmatprep.subr.mxu0 0.0
        %1214 = vmatpush1.msra.mxu0 0.0
        %1215 = vmatprep.subr.mxu0 0.0
        %1216 = vmatpush1.msra.mxu0 0.0
        %1217 = vmatprep.subr.mxu0 0.0
        %1218 = vmatpush1.msra.mxu0 0.0
        %1219 = vmatprep.mubr.f32.mxu0 0.0
        %v1220 = vand.u32 %v917, 4294901760
        %v1221 = vsub.f32 %v917, %v1220
        %v1222 = vand.u32 %v1221, 4294901760
        %1223 = vmatmul.mubr.f32.gmra.mrb[0].mxu0 %v1222
        %v1224 = vpop.f32.mrb[0].mxu0
        %v1225 = vadd.f32 %v1150, %v1224
        %v1226 = vpop.f32.mrb[0].mxu0
        %1227 = vdwg.mxu0
        %1228 = vmatprep.subr.mxu0 0.0
        %v1229 = vand.u32 %v913, 4294901760
        %v1230 = vsub.f32 %v913, %v1229
        %v1231 = vand.u32 %v1230, 4294901760
        %1232 = vmatpush1.msra.mxu0 %v1231
        %1233 = vmatprep.subr.mxu0 0.0
        %v1234 = vand.u32 %v914, 4294901760
        %v1235 = vsub.f32 %v914, %v1234
        %v1236 = vand.u32 %v1235, 4294901760
        %1237 = vmatpush1.msra.mxu0 %v1236
        %1238 = vmatprep.subr.mxu0 0.0
        %1239 = vmatpush1.msra.mxu0 0.0
        %1240 = vmatprep.subr.mxu0 0.0
        %1241 = vmatpush1.msra.mxu0 0.0
        %1242 = vmatprep.subr.mxu0 0.0
        %1243 = vmatpush1.msra.mxu0 0.0
        %1244 = vmatprep.subr.mxu0 0.0
        %1245 = vmatpush1.msra.mxu0 0.0
        %1246 = vmatprep.subr.mxu0 0.0
        %1247 = vmatpush1.msra.mxu0 0.0
        %1248 = vmatprep.subr.mxu0 0.0
        %1249 = vmatpush1.msra.mxu0 0.0
        %1250 = vmatprep.subr.mxu0 0.0
        %1251 = vmatpush1.msra.mxu0 0.0
        %1252 = vmatprep.subr.mxu0 0.0
        %1253 = vmatpush1.msra.mxu0 0.0
        %1254 = vmatprep.subr.mxu0 0.0
        %1255 = vmatpush1.msra.mxu0 0.0
        %1256 = vmatprep.subr.mxu0 0.0
        %1257 = vmatpush1.msra.mxu0 0.0
        %1258 = vmatprep.subr.mxu0 0.0
        %1259 = vmatpush1.msra.mxu0 0.0
        %1260 = vmatprep.subr.mxu0 0.0
        %1261 = vmatpush1.msra.mxu0 0.0
        %1262 = vmatprep.subr.mxu0 0.0
        %1263 = vmatpush1.msra.mxu0 0.0
        %1264 = vmatprep.subr.mxu0 0.0
        %1265 = vmatpush1.msra.mxu0 0.0
        %1266 = vmatprep.subr.mxu0 0.0
        %1267 = vmatpush1.msra.mxu0 0.0
        %1268 = vmatprep.subr.mxu0 0.0
        %1269 = vmatpush1.msra.mxu0 0.0
        %1270 = vmatprep.subr.mxu0 0.0
        %1271 = vmatpush1.msra.mxu0 0.0
        %1272 = vmatprep.subr.mxu0 0.0
        %1273 = vmatpush1.msra.mxu0 0.0
        %1274 = vmatprep.subr.mxu0 0.0
        %1275 = vmatpush1.msra.mxu0 0.0
        %1276 = vmatprep.subr.mxu0 0.0
        %1277 = vmatpush1.msra.mxu0 0.0
        %1278 = vmatprep.subr.mxu0 0.0
        %1279 = vmatpush1.msra.mxu0 0.0
        %1280 = vmatprep.subr.mxu0 0.0
        %1281 = vmatpush1.msra.mxu0 0.0
        %1282 = vmatprep.subr.mxu0 0.0
        %1283 = vmatpush1.msra.mxu0 0.0
        %1284 = vmatprep.subr.mxu0 0.0
        %1285 = vmatpush1.msra.mxu0 0.0
        %1286 = vmatprep.subr.mxu0 0.0
        %1287 = vmatpush1.msra.mxu0 0.0
        %1288 = vmatprep.subr.mxu0 0.0
        %1289 = vmatpush1.msra.mxu0 0.0
        %1290 = vmatprep.subr.mxu0 0.0
        %1291 = vmatpush1.msra.mxu0 0.0
        %1292 = vmatprep.subr.mxu0 0.0
        %1293 = vmatpush1.msra.mxu0 0.0
        %1294 = vmatprep.subr.mxu0 0.0
        %1295 = vmatpush1.msra.mxu0 0.0
        %1296 = vmatprep.subr.mxu0 0.0
        %1297 = vmatpush1.msra.mxu0 0.0
        %1298 = vmatprep.mubr.f32.mxu0 0.0
        %v1299 = vand.u32 %v917, 4294901760
        %1300 = vmatmul.mubr.f32.gmra.mrb[0].mxu0 %v1299
        %v1301 = vpop.f32.mrb[0].mxu0
        %v1302 = vadd.f32 %v1225, %v1301
        %v1303 = vpop.f32.mrb[0].mxu0
        %1304 = vdwg.mxu0
        %1305 = vmatprep.subr.mxu0 0.0
        %v1306 = vand.u32 %v913, 4294901760
        %1307 = vmatpush1.msra.mxu0 %v1306
        %1308 = vmatprep.subr.mxu0 0.0
        %v1309 = vand.u32 %v914, 4294901760
        %1310 = vmatpush1.msra.mxu0 %v1309
        %1311 = vmatprep.subr.mxu0 0.0
        %1312 = vmatpush1.msra.mxu0 0.0
        %1313 = vmatprep.subr.mxu0 0.0
        %1314 = vmatpush1.msra.mxu0 0.0
        %1315 = vmatprep.subr.mxu0 0.0
        %1316 = vmatpush1.msra.mxu0 0.0
        %1317 = vmatprep.subr.mxu0 0.0
        %1318 = vmatpush1.msra.mxu0 0.0
        %1319 = vmatprep.subr.mxu0 0.0
        %1320 = vmatpush1.msra.mxu0 0.0
        %1321 = vmatprep.subr.mxu0 0.0
        %1322 = vmatpush1.msra.mxu0 0.0
        %1323 = vmatprep.subr.mxu0 0.0
        %1324 = vmatpush1.msra.mxu0 0.0
        %1325 = vmatprep.subr.mxu0 0.0
        %1326 = vmatpush1.msra.mxu0 0.0
        %1327 = vmatprep.subr.mxu0 0.0
        %1328 = vmatpush1.msra.mxu0 0.0
        %1329 = vmatprep.subr.mxu0 0.0
        %1330 = vmatpush1.msra.mxu0 0.0
        %1331 = vmatprep.subr.mxu0 0.0
        %1332 = vmatpush1.msra.mxu0 0.0
        %1333 = vmatprep.subr.mxu0 0.0
        %1334 = vmatpush1.msra.mxu0 0.0
        %1335 = vmatprep.subr.mxu0 0.0
        %1336 = vmatpush1.msra.mxu0 0.0
        %1337 = vmatprep.subr.mxu0 0.0
        %1338 = vmatpush1.msra.mxu0 0.0
        %1339 = vmatprep.subr.mxu0 0.0
        %1340 = vmatpush1.msra.mxu0 0.0
        %1341 = vmatprep.subr.mxu0 0.0
        %1342 = vmatpush1.msra.mxu0 0.0
        %1343 = vmatprep.subr.mxu0 0.0
        %1344 = vmatpush1.msra.mxu0 0.0
        %1345 = vmatprep.subr.mxu0 0.0
        %1346 = vmatpush1.msra.mxu0 0.0
        %1347 = vmatprep.subr.mxu0 0.0
        %1348 = vmatpush1.msra.mxu0 0.0
        %1349 = vmatprep.subr.mxu0 0.0
        %1350 = vmatpush1.msra.mxu0 0.0
        %1351 = vmatprep.subr.mxu0 0.0
        %1352 = vmatpush1.msra.mxu0 0.0
        %1353 = vmatprep.subr.mxu0 0.0
        %1354 = vmatpush1.msra.mxu0 0.0
        %1355 = vmatprep.subr.mxu0 0.0
        %1356 = vmatpush1.msra.mxu0 0.0
        %1357 = vmatprep.subr.mxu0 0.0
        %1358 = vmatpush1.msra.mxu0 0.0
        %1359 = vmatprep.subr.mxu0 0.0
        %1360 = vmatpush1.msra.mxu0 0.0
        %1361 = vmatprep.subr.mxu0 0.0
        %1362 = vmatpush1.msra.mxu0 0.0
        %1363 = vmatprep.subr.mxu0 0.0
        %1364 = vmatpush1.msra.mxu0 0.0
        %1365 = vmatprep.subr.mxu0 0.0
        %1366 = vmatpush1.msra.mxu0 0.0
        %1367 = vmatprep.subr.mxu0 0.0
        %1368 = vmatpush1.msra.mxu0 0.0
        %1369 = vmatprep.subr.mxu0 0.0
        %1370 = vmatpush1.msra.mxu0 0.0
        %1371 = vmatprep.mubr.f32.mxu0 0.0
        %v1372 = vand.u32 %v917, 4294901760
        %1373 = vmatmul.mubr.f32.gmra.mrb[0].mxu0 %v1372
        %v1374 = vpop.f32.mrb[0].mxu0
        %v1375 = vadd.f32 %v1302, %v1374
        %v1376 = vpop.f32.mrb[0].mxu0
        %1377 = vdwg.mxu0
        %v1379 = vcombine.high %v1375, %v1375
        %v1381 = vunpack.c.l.s4 1966171168
        %v1382 = vunpack.c.0.s8 %v1381
        %v1383 = vlaneseq
        %v1384 = vshrl.u32 %v1383, 7
        %v1385 = vsub.s32 %v1382, %v1384
        %v1386 = vrot.slane %v1375, %v1385
        %v1388 = vunpack.c.l.s4 1966171168
        %v1389 = vunpack.c.0.s8 %v1388
        %v1390 = vlaneseq
        %v1391 = vshrl.u32 %v1390, 7
        %v1392 = vsub.s32 %v1389, %v1391
        %v1393 = vrot.slane %v1379, %v1392
        %v1394 = vcombine.high %v1386, %v1386
        %v1395 = vcombine.high %v1393, %v1393
        %v1397 = vunpack.c.l.s4 1966171168
        %v1398 = vunpack.c.0.s8 %v1397
        %v1399 = vlaneseq
        %v1400 = vshrl.u32 %v1399, 7
        %v1401 = vsub.s32 %v1398, %v1400
        %v1402 = vrot.slane %v1386, %v1401
        %v1404 = vunpack.c.l.s4 1966171168
        %v1405 = vunpack.c.0.s8 %v1404
        %v1406 = vlaneseq
        %v1407 = vshrl.u32 %v1406, 7
        %v1408 = vsub.s32 %v1405, %v1407
        %v1409 = vrot.slane %v1393, %v1408
        %v1411 = vunpack.c.l.s4 1966171168
        %v1412 = vunpack.c.0.s8 %v1411
        %v1413 = vlaneseq
        %v1414 = vshrl.u32 %v1413, 7
        %v1415 = vsub.s32 %v1412, %v1414
        %v1416 = vrot.slane %v1394, %v1415
        %v1418 = vunpack.c.l.s4 1966171168
        %v1419 = vunpack.c.0.s8 %v1418
        %v1420 = vlaneseq
        %v1421 = vshrl.u32 %v1420, 7
        %v1422 = vsub.s32 %v1419, %v1421
        %v1423 = vrot.slane %v1395, %v1422
        %v1424 = vcombine.high %v1402, %v1402
        %v1425 = vcombine.high %v1409, %v1409
        %v1426 = vcombine.high %v1416, %v1416
        %v1427 = vcombine.high %v1423, %v1423
        %v1428 = vld [vmem:[%s2] sm:$0xf]
        %v1429 = vlaneseq
        %v1430 = vshrl.u32 %v1429, 7
        %v1431 = vsub.s32 0, %v1430
        %v1432 = vrot.slane %v1402, %v1431
        %v1433 = vlaneseq
        %v1434 = vshrl.u32 %v1433, 7
        %v1435 = vsub.s32 0, %v1434
        %v1436 = vrot.slane %v1416, %v1435
        %v1437 = vlaneseq
        %v1438 = vshrl.u32 %v1437, 7
        %v1439 = vsub.s32 0, %v1438
        %v1440 = vrot.slane %v1424, %v1439
        %v1441 = vlaneseq
        %v1442 = vshrl.u32 %v1441, 7
        %v1443 = vsub.s32 0, %v1442
        %v1444 = vrot.slane %v1426, %v1443
        %v1445 = vlaneseq
        %v1446 = vshrl.u32 %v1445, 7
        %v1447 = vsub.s32 0, %v1446
        %v1448 = vrot.slane %v1409, %v1447
        %v1449 = vlaneseq
        %v1450 = vshrl.u32 %v1449, 7
        %v1451 = vsub.s32 0, %v1450
        %v1452 = vrot.slane %v1423, %v1451
        %v1453 = vlaneseq
        %v1454 = vshrl.u32 %v1453, 7
        %v1455 = vsub.s32 0, %v1454
        %v1456 = vrot.slane %v1425, %v1455
        %v1457 = vlaneseq
        %v1458 = vshrl.u32 %v1457, 7
        %v1459 = vsub.s32 0, %v1458
        %v1460 = vrot.slane %v1427, %v1459
        %v1469 = vmul.f32 %v1432, %v1428
        %v1470 = vmul.f32 %v1436, %v1428
        %v1471 = vmul.f32 %v1440, %v1428
        %v1472 = vmul.f32 %v1444, %v1428
        %v1473 = vmul.f32 %v1448, %v1428
        %v1474 = vmul.f32 %v1452, %v1428
        %v1475 = vmul.f32 %v1456, %v1428
        %v1476 = vmul.f32 %v1460, %v1428
        %s1477 = sld [smem:[#allocation2 + $0x1]]
        %v1478 = vstv %s1477
        %v1479 = vadd.f32 %v1469, %v1478
        %v1480 = vadd.f32 %v1470, %v1478
        %v1481 = vadd.f32 %v1471, %v1478
        %v1482 = vadd.f32 %v1472, %v1478
        %v1483 = vadd.f32 %v1473, %v1478
        %v1484 = vadd.f32 %v1474, %v1478
        %v1485 = vadd.f32 %v1475, %v1478
        %v1486 = vadd.f32 %v1476, %v1478
        %1487 = vst.msk [vmem:[%s259] sm:$0xf] %vm284, %v1479
        %1488 = vst.msk [vmem:[%s259 + $0x4] sm:$0xf] %vm284, %v1480
        %1489 = vst.msk [vmem:[%s259 + $0x8] sm:$0xf] %vm284, %v1481
        %1490 = vst.msk [vmem:[%s259 + $0xc] sm:$0xf] %vm284, %v1482
        %1491 = vst.msk [vmem:[%s259 + $0x10] sm:$0xf] %vm284, %v1483
        %1492 = vst.msk [vmem:[%s259 + $0x14] sm:$0xf] %vm284, %v1484
        %1493 = vst.msk [vmem:[%s259 + $0x18] sm:$0xf] %vm284, %v1485
        %1494 = vst.msk [vmem:[%s259 + $0x1c] sm:$0xf] %vm284, %v1486
        %s1495 = sand.u32 %s160, 1
        %s1496 = scalar_lea.sflag [#allocation3], %s1495
        %s1497 = sand.u32 %s160, 1
        %s1498 = smul.addr %s1497, 32
        %s1499 = scalar_lea.vmem [#allocation5], %s1498
        // Predicated region
        $region49: #{inte_ae_forward.1} parent=43 // pred_check
          %p1500 = pneg %p170
        $region50: #{inte_ae_forward.1} parent=43 // pred_check_branch
          %1502 = sbr.rel (%p1500) target = $region52
        $region51: #{inte_ae_forward.1} parent=43 // pred_region
          %s1503 = smul.u32 8, %s21
          %s1505 = ssub.s32 512, 512
          %1506 = vsyncadd %s1496, %s1505
          %s1507 = smul.addr %s1503, 64
          %s1508 = scalar_lea.hbm %s6, %s1507
          %s1509 = sshll.u32 %s1499, 4
          %s1510 = int_to_ptr.vmem [resolvable:$true] %s1509
          %1515 = dma.vmem_to_hbm [thread:$0]  %s1510, 512, %s1508, %s1496, 64, 64, 4
        $region52: #{inte_ae_forward.1} parent=43 // pred_fallthru
          _
      $region44: #{inte_ae_forward.1} parent=5 // pred_fallthru
        _
      %p1516 = scmp.le.s32.totalorder 2, %s16
      // Predicated region
      $region53: #{inte_ae_forward.1} parent=5 // pred_check
        %p1517 = pneg %p1516
      $region54: #{inte_ae_forward.1} parent=5 // pred_check_branch
        %1519 = sbr.rel (%p1517) target = $region56
      $region55: #{inte_ae_forward.1} parent=5 // pred_region
        %s1520 = ssub.s32 %s16, 2
        // Predicated region
        $region57: #{inte_ae_forward.1} parent=55 // pred_check
          %p1521 = pneg %p176
        $region58: #{inte_ae_forward.1} parent=55 // pred_check_branch
          %1523 = sbr.rel (%p1521) target = $region60
        $region59: #{inte_ae_forward.1} parent=55 // pred_region
          %s1524 = sand.u32 %s161, 1
          %s1525 = scalar_lea.sflag [#allocation3], %s1524
          %s1526 = sand.u32 %s161, 1
          %s1527 = smul.addr %s1526, 32
          %s1528 = scalar_lea.vmem [#allocation5], %s1527
          %1529 = dma.done %s1525, 512
        $region60: #{inte_ae_forward.1} parent=55 // pred_fallthru
          _
      $region56: #{inte_ae_forward.1} parent=5 // pred_fallthru
        _
    $region6: #{inte_ae_forward.1} parent=1 // loop_footer
      %s20 = sadd.s32 1, %s16
    $region7: #{inte_ae_forward.1} parent=1 // loop_footer_branch
      %15 = sbr.rel target = $region3
    $region8: #{inte_ae_forward.1} parent=1 // loop_exit
      _
    %1530 = vsyncpa [#allocation3], 1
    %s1531 = scalar_lea.sflag [#allocation3], 1
    %1532 = vsyncpa %s1531, 1
    %1533 = vsyncpa [#allocation4], 1
    %s1534 = scalar_lea.sflag [#allocation4], 1
    %1535 = vsyncpa %s1534, 1

</llo_original>
